<compile_context>
chip_gen: v6e
topology: v6e:2x2x1
jax: 0.10.0
libtpu: 0.0.40
codegen_flags: <defaults>
</compile_context>

<pallas_src>
import math
import functools

import jax
import jax.numpy as jnp
from jax.experimental import pallas as pl
from jax.experimental.pallas import tpu as pltpu


# ------------------------------ Pallas kernel -------------------------------

def _bart_attention_kernel(hq_ref, hkv_ref, mask_ref,
                           wq_ref, bq_ref, wk_ref, bk_ref, wv_ref, bv_ref,
                           wo_ref, bo_ref, o_ref):
    """Fused BartAttention for one batch element.

    hq_ref  : (T, D)   query-side hidden states
    hkv_ref : (S, D)   key/value-side hidden states (== hq for self-attention)
    mask_ref: (T, S)   additive attention mask (shared across heads)
    wq/wk/wv: (H, D, Dh) bf16 per-head projection weights (scaling folded in wq)
    bq/bk/bv: (H, 1, Dh) f32 per-head biases
    wo      : (H, Dh, D) bf16 per-head slice of the output projection
    bo      : (1, D)   f32 output bias
    o_ref   : (T, D)   attention output (lane-dense, already head-packed)
    """
    T, D = hq_ref.shape
    H = wq_ref.shape[0]

    x_q = hq_ref[...].astype(jnp.bfloat16)
    x_kv = hkv_ref[...].astype(jnp.bfloat16)
    mask = mask_ref[...]

    # Output accumulator initialized with the output-projection bias.
    acc = jnp.zeros((T, D), jnp.float32) + bo_ref[...]

    # Static unroll over heads: small 2-D MXU dots only, no 3-D reshapes.
    for h in range(H):
        q_h = jnp.dot(x_q, wq_ref[h],
                      preferred_element_type=jnp.float32) + bq_ref[h]   # (T, Dh)
        k_h = jnp.dot(x_kv, wk_ref[h],
                      preferred_element_type=jnp.float32) + bk_ref[h]   # (S, Dh)
        v_h = jnp.dot(x_kv, wv_ref[h],
                      preferred_element_type=jnp.float32) + bv_ref[h]   # (S, Dh)

        # scores: contract head_dim of q and k directly (no explicit transpose)
        s = jax.lax.dot_general(
            q_h.astype(jnp.bfloat16), k_h.astype(jnp.bfloat16),
            (((1,), (1,)), ((), ())),
            preferred_element_type=jnp.float32) + mask                  # (T, S)

        s = s - jnp.max(s, axis=-1, keepdims=True)
        p = jnp.exp(s)
        p = p * pl.reciprocal(jnp.sum(p, axis=-1, keepdims=True), approx=True)

        o_h = jnp.dot(p.astype(jnp.bfloat16), v_h.astype(jnp.bfloat16),
                      preferred_element_type=jnp.float32)               # (T, Dh)

        # Output projection distributed over heads: accumulate into (T, D).
        acc = acc + jnp.dot(o_h.astype(jnp.bfloat16), wo_ref[h],
                            preferred_element_type=jnp.float32)

    o_ref[...] = acc


# ------------------------------ wrappers -------------------------------------

def init_bart_attention_params(key, embed_dim):
    """Raw f32 parameters in torch-Linear-like layout (W stored as [in, out])."""
    D = embed_dim
    bound = 1.0 / math.sqrt(D)
    ks = jax.random.split(key, 8)

    def u(k, shape):
        return jax.random.uniform(k, shape, jnp.float32, -bound, bound)

    return {
        "wq": u(ks[0], (D, D)), "bq": u(ks[1], (D,)),
        "wk": u(ks[2], (D, D)), "bk": u(ks[3], (D,)),
        "wv": u(ks[4], (D, D)), "bv": u(ks[5], (D,)),
        "wo": u(ks[6], (D, D)), "bo": u(ks[7], (D,)),
    }


def prepare_fused_params(raw, embed_dim, num_heads):
    """One-time (outside jit) re-layout: per-head weights, scaling folded into q,
    matmul operands pre-cast to bf16 (biases stay f32 for the f32 accumulate)."""
    D, H = embed_dim, num_heads
    assert D % H == 0
    Dh = D // H
    scaling = Dh ** (-0.5)

    def per_head_out(w):  # (D_in, D_out) -> (H, D_in, Dh); output cols grouped by head
        return jnp.transpose(w.reshape(D, H, Dh), (1, 0, 2))

    return {
        "wq": per_head_out(raw["wq"] * scaling).astype(jnp.bfloat16),
        "bq": (raw["bq"] * scaling).reshape(H, 1, Dh).astype(jnp.float32),
        "wk": per_head_out(raw["wk"]).astype(jnp.bfloat16),
        "bk": raw["bk"].reshape(H, 1, Dh).astype(jnp.float32),
        "wv": per_head_out(raw["wv"]).astype(jnp.bfloat16),
        "bv": raw["bv"].reshape(H, 1, Dh).astype(jnp.float32),
        "wo": raw["wo"].reshape(H, Dh, D).astype(jnp.bfloat16),  # input rows grouped by head
        "bo": raw["bo"].reshape(1, D).astype(jnp.float32),
    }


def bart_attention_forward(fp, hidden_states, attention_mask, key_value_states=None):
    """BartAttention.forward (eval mode, no KV cache). Returns attn_output."""
    B, T, D = hidden_states.shape
    H, _, Dh = fp["wq"].shape

    kv = hidden_states if key_value_states is None else key_value_states
    S = kv.shape[1]

    if attention_mask is None:
        mask = jnp.zeros((B, T, S), jnp.float32)
    else:
        mask = attention_mask.astype(jnp.float32).reshape(B, T, S)

    return pl.pallas_call(
        _bart_attention_kernel,
        out_shape=jax.ShapeDtypeStruct((B, T, D), jnp.float32),
        grid=(B,),
        in_specs=[
            pl.BlockSpec((pl.Squeezed(), T, D), lambda b: (b, 0, 0)),   # hidden (q side)
            pl.BlockSpec((pl.Squeezed(), S, D), lambda b: (b, 0, 0)),   # hidden (kv side)
            pl.BlockSpec((pl.Squeezed(), T, S), lambda b: (b, 0, 0)),   # additive mask
            pl.BlockSpec((H, D, Dh), lambda b: (0, 0, 0)),              # wq (scaled)
            pl.BlockSpec((H, 1, Dh), lambda b: (0, 0, 0)),              # bq (scaled)
            pl.BlockSpec((H, D, Dh), lambda b: (0, 0, 0)),              # wk
            pl.BlockSpec((H, 1, Dh), lambda b: (0, 0, 0)),              # bk
            pl.BlockSpec((H, D, Dh), lambda b: (0, 0, 0)),              # wv
            pl.BlockSpec((H, 1, Dh), lambda b: (0, 0, 0)),              # bv
            pl.BlockSpec((H, Dh, D), lambda b: (0, 0, 0)),              # wo
            pl.BlockSpec((1, D), lambda b: (0, 0)),                     # bo
        ],
        out_specs=pl.BlockSpec((pl.Squeezed(), T, D), lambda b: (b, 0, 0)),
        compiler_params=pltpu.CompilerParams(
            dimension_semantics=("parallel",)),
    )(hidden_states.astype(jnp.float32), kv.astype(jnp.float32), mask,
      fp["wq"], fp["bq"], fp["wk"], fp["bk"], fp["wv"], fp["bv"],
      fp["wo"], fp["bo"])


# ------------------------ pure-JAX reference (f32) ---------------------------

def bart_attention_ref(raw, hidden_states, attention_mask, num_heads,
                       key_value_states=None):
    B, T, D = hidden_states.shape
    H = num_heads
    Dh = D // H
    scaling = Dh ** (-0.5)
    kv = hidden_states if key_value_states is None else key_value_states
    S = kv.shape[1]

    q = (hidden_states @ raw["wq"] + raw["bq"]) * scaling
    k = kv @ raw["wk"] + raw["bk"]
    v = kv @ raw["wv"] + raw["bv"]
    q = q.reshape(B, T, H, Dh).transpose(0, 2, 1, 3)
    k = k.reshape(B, S, H, Dh).transpose(0, 2, 1, 3)
    v = v.reshape(B, S, H, Dh).transpose(0, 2, 1, 3)

    s = jnp.einsum("bhtd,bhsd->bhts", q, k) + attention_mask          # (B,H,T,S)
    p = jax.nn.softmax(s, axis=-1)
    o = jnp.einsum("bhts,bhsd->bhtd", p, v)
    o = o.transpose(0, 2, 1, 3).reshape(B, T, D)
    return o @ raw["wo"] + raw["bo"]


# ---------------------------------- main --------------------------------------

if __name__ == "__main__":
    D, H = 32, 4          # embed_dim, num_heads  (head_dim = 8)
    B, T, S = 2, 8, 16    # batch, target len, source (encoder) len

    key = jax.random.PRNGKey(0)
    k_par, k_hid, k_enc = jax.random.split(key, 3)

    raw = init_bart_attention_params(k_par, D)
    fp = prepare_fused_params(raw, D, H)

    hidden = jax.random.normal(k_hid, (B, T, D), jnp.float32)
    enc_states = jax.random.normal(k_enc, (B, S, D), jnp.float32)

    # Additive masks (HF-style large-negative, avoids -inf NaN corner case).
    NEG = jnp.float32(-1e9)
    causal = jnp.where(jnp.arange(T)[None, :] <= jnp.arange(T)[:, None], 0.0, NEG)
    key_pad = jnp.zeros((B, T), jnp.float32).at[1, T - 2:].set(NEG)
    self_mask = causal[None, None, :, :] + key_pad[:, None, None, :]      # (B,1,T,T)

    enc_pad = jnp.zeros((B, S), jnp.float32).at[1, S - 4:].set(NEG)
    cross_mask = jnp.broadcast_to(enc_pad[:, None, None, :], (B, 1, T, S))

    self_fwd = jax.jit(lambda p, x, m: bart_attention_forward(p, x, m))
    cross_fwd = jax.jit(lambda p, x, m, kvs: bart_attention_forward(p, x, m, kvs))

    out_self = jax.block_until_ready(self_fwd(fp, hidden, self_mask))
    out_cross = jax.block_until_ready(cross_fwd(fp, hidden, cross_mask, enc_states))

    ref_self = bart_attention_ref(raw, hidden, self_mask, H)
    ref_cross = bart_attention_ref(raw, hidden, cross_mask, H,
                                   key_value_states=enc_states)

    assert out_self.shape == (B, T, D)
    assert out_cross.shape == (B, T, D)
    assert bool(jnp.all(jnp.isfinite(out_self)))
    assert bool(jnp.all(jnp.isfinite(out_cross)))
    # bf16-operand matmuls with f32 accumulation -> loose-but-tight-enough tol
    assert bool(jnp.allclose(out_self, ref_self, atol=2e-2, rtol=2e-2))
    assert bool(jnp.allclose(out_cross, ref_cross, atol=2e-2, rtol=2e-2))

    print("KERNEL_OK")
</pallas_src>

<mosaic_0001>
module attributes {stable_mosaic.version = 11 : i64} {
  func.func @_bart_attention_kernel(%arg0: i32, %arg1: memref<1x8x32xf32, #tpu.memory_space<vmem>>, %arg2: memref<1x8x32xf32, #tpu.memory_space<vmem>>, %arg3: memref<1x8x8xf32, #tpu.memory_space<vmem>>, %arg4: memref<4x32x8xbf16, #tpu.memory_space<vmem>>, %arg5: memref<4x1x8xf32, #tpu.memory_space<vmem>>, %arg6: memref<4x32x8xbf16, #tpu.memory_space<vmem>>, %arg7: memref<4x1x8xf32, #tpu.memory_space<vmem>>, %arg8: memref<4x32x8xbf16, #tpu.memory_space<vmem>>, %arg9: memref<4x1x8xf32, #tpu.memory_space<vmem>>, %arg10: memref<4x8x32xbf16, #tpu.memory_space<vmem>>, %arg11: memref<1x32xf32, #tpu.memory_space<vmem>>, %arg12: memref<1x8x32xf32, #tpu.memory_space<vmem>>) attributes {dimension_semantics = [#tpu.dimension_semantics<parallel>], iteration_bounds = array<i64: 2>, scalar_prefetch = 0 : i64, scratch_operands = 0 : i64, tpu.core_type = #tpu.core_type<tc>, window_params = [{transform_indices = @transform_0, window_bounds = array<i64: 1, 8, 32>}, {transform_indices = @transform_1, window_bounds = array<i64: 1, 8, 32>}, {transform_indices = @transform_2, window_bounds = array<i64: 1, 8, 8>}, {pipeline_mode = #tpu.pipeline_mode<synchronous>, transform_indices = @transform_3, window_bounds = array<i64: 4, 32, 8>}, {pipeline_mode = #tpu.pipeline_mode<synchronous>, transform_indices = @transform_4, window_bounds = array<i64: 4, 1, 8>}, {pipeline_mode = #tpu.pipeline_mode<synchronous>, transform_indices = @transform_5, window_bounds = array<i64: 4, 32, 8>}, {pipeline_mode = #tpu.pipeline_mode<synchronous>, transform_indices = @transform_6, window_bounds = array<i64: 4, 1, 8>}, {pipeline_mode = #tpu.pipeline_mode<synchronous>, transform_indices = @transform_7, window_bounds = array<i64: 4, 32, 8>}, {pipeline_mode = #tpu.pipeline_mode<synchronous>, transform_indices = @transform_8, window_bounds = array<i64: 4, 1, 8>}, {pipeline_mode = #tpu.pipeline_mode<synchronous>, transform_indices = @transform_9, window_bounds = array<i64: 4, 8, 32>}, {pipeline_mode = #tpu.pipeline_mode<synchronous>, transform_indices = @transform_10, window_bounds = array<i64: 1, 32>}, {transform_indices = @transform_11, window_bounds = array<i64: 1, 8, 32>}]} {
    %c0 = arith.constant 0 : index
    %c0_0 = arith.constant 0 : index
    %c0_1 = arith.constant 0 : index
    %0 = vector.load %arg1[%c0, %c0_0, %c0_1] : memref<1x8x32xf32, #tpu.memory_space<vmem>>, vector<1x8x32xf32>
    %1 = vector.shape_cast %0 : vector<1x8x32xf32> to vector<8x32xf32>
    %2 = arith.truncf %1 : vector<8x32xf32> to vector<8x32xbf16>
    %c0_2 = arith.constant 0 : index
    %c0_3 = arith.constant 0 : index
    %c0_4 = arith.constant 0 : index
    %3 = vector.load %arg2[%c0_2, %c0_3, %c0_4] : memref<1x8x32xf32, #tpu.memory_space<vmem>>, vector<1x8x32xf32>
    %4 = vector.shape_cast %3 : vector<1x8x32xf32> to vector<8x32xf32>
    %5 = arith.truncf %4 : vector<8x32xf32> to vector<8x32xbf16>
    %c0_5 = arith.constant 0 : index
    %c0_6 = arith.constant 0 : index
    %c0_7 = arith.constant 0 : index
    %6 = vector.load %arg3[%c0_5, %c0_6, %c0_7] : memref<1x8x8xf32, #tpu.memory_space<vmem>>, vector<1x8x8xf32>
    %7 = vector.shape_cast %6 : vector<1x8x8xf32> to vector<8x8xf32>
    %cst = arith.constant 0.000000e+00 : f32
    %8 = vector.broadcast %cst : f32 to vector<8x32xf32>
    %c0_8 = arith.constant 0 : index
    %c0_9 = arith.constant 0 : index
    %9 = vector.load %arg11[%c0_8, %c0_9] : memref<1x32xf32, #tpu.memory_space<vmem>>, vector<1x32xf32>
    %10 = vector.broadcast %9 : vector<1x32xf32> to vector<8x32xf32>
    %11 = arith.addf %8, %10 : vector<8x32xf32>
    %c0_10 = arith.constant 0 : index
    %c0_11 = arith.constant 0 : index
    %c0_12 = arith.constant 0 : index
    %12 = vector.load %arg4[%c0_10, %c0_11, %c0_12] : memref<4x32x8xbf16, #tpu.memory_space<vmem>>, vector<1x32x8xbf16>
    %13 = vector.shape_cast %12 : vector<1x32x8xbf16> to vector<32x8xbf16>
    %cst_13 = arith.constant dense<0.000000e+00> : vector<8x8xf32>
    %14 = tpu.matmul %2, %13, %cst_13 {dimension_numbers = #tpu.dot_dimension_numbers<[1], [0], [0], [1], [0, 0, 1, 1], [], []>} : vector<8x32xbf16>, vector<32x8xbf16>, vector<8x8xf32> -> vector<8x8xf32>
    %c0_14 = arith.constant 0 : index
    %c0_15 = arith.constant 0 : index
    %c0_16 = arith.constant 0 : index
    %15 = vector.load %arg5[%c0_14, %c0_15, %c0_16] : memref<4x1x8xf32, #tpu.memory_space<vmem>>, vector<1x1x8xf32>
    %16 = vector.shape_cast %15 : vector<1x1x8xf32> to vector<1x8xf32>
    %17 = vector.broadcast %16 : vector<1x8xf32> to vector<8x8xf32>
    %18 = arith.addf %14, %17 : vector<8x8xf32>
    %c0_17 = arith.constant 0 : index
    %c0_18 = arith.constant 0 : index
    %c0_19 = arith.constant 0 : index
    %19 = vector.load %arg6[%c0_17, %c0_18, %c0_19] : memref<4x32x8xbf16, #tpu.memory_space<vmem>>, vector<1x32x8xbf16>
    %20 = vector.shape_cast %19 : vector<1x32x8xbf16> to vector<32x8xbf16>
    %cst_20 = arith.constant dense<0.000000e+00> : vector<8x8xf32>
    %21 = tpu.matmul %5, %20, %cst_20 {dimension_numbers = #tpu.dot_dimension_numbers<[1], [0], [0], [1], [0, 0, 1, 1], [], []>} : vector<8x32xbf16>, vector<32x8xbf16>, vector<8x8xf32> -> vector<8x8xf32>
    %c0_21 = arith.constant 0 : index
    %c0_22 = arith.constant 0 : index
    %c0_23 = arith.constant 0 : index
    %22 = vector.load %arg7[%c0_21, %c0_22, %c0_23] : memref<4x1x8xf32, #tpu.memory_space<vmem>>, vector<1x1x8xf32>
    %23 = vector.shape_cast %22 : vector<1x1x8xf32> to vector<1x8xf32>
    %24 = vector.broadcast %23 : vector<1x8xf32> to vector<8x8xf32>
    %25 = arith.addf %21, %24 : vector<8x8xf32>
    %c0_24 = arith.constant 0 : index
    %c0_25 = arith.constant 0 : index
    %c0_26 = arith.constant 0 : index
    %26 = vector.load %arg8[%c0_24, %c0_25, %c0_26] : memref<4x32x8xbf16, #tpu.memory_space<vmem>>, vector<1x32x8xbf16>
    %27 = vector.shape_cast %26 : vector<1x32x8xbf16> to vector<32x8xbf16>
    %cst_27 = arith.constant dense<0.000000e+00> : vector<8x8xf32>
    %28 = tpu.matmul %5, %27, %cst_27 {dimension_numbers = #tpu.dot_dimension_numbers<[1], [0], [0], [1], [0, 0, 1, 1], [], []>} : vector<8x32xbf16>, vector<32x8xbf16>, vector<8x8xf32> -> vector<8x8xf32>
    %c0_28 = arith.constant 0 : index
    %c0_29 = arith.constant 0 : index
    %c0_30 = arith.constant 0 : index
    %29 = vector.load %arg9[%c0_28, %c0_29, %c0_30] : memref<4x1x8xf32, #tpu.memory_space<vmem>>, vector<1x1x8xf32>
    %30 = vector.shape_cast %29 : vector<1x1x8xf32> to vector<1x8xf32>
    %31 = vector.broadcast %30 : vector<1x8xf32> to vector<8x8xf32>
    %32 = arith.addf %28, %31 : vector<8x8xf32>
    %33 = arith.truncf %18 : vector<8x8xf32> to vector<8x8xbf16>
    %34 = arith.truncf %25 : vector<8x8xf32> to vector<8x8xbf16>
    %cst_31 = arith.constant dense<0.000000e+00> : vector<8x8xf32>
    %35 = tpu.matmul %33, %34, %cst_31 {dimension_numbers = #tpu.dot_dimension_numbers<[1], [1], [0], [0], [0, 0, 1, 0], [], []>} : vector<8x8xbf16>, vector<8x8xbf16>, vector<8x8xf32> -> vector<8x8xf32>
    %36 = arith.addf %35, %7 : vector<8x8xf32>
    %cst_32 = arith.constant dense<0xFF800000> : vector<8xf32>
    %37 = vector.multi_reduction <maximumf>, %36, %cst_32 [1] : vector<8x8xf32> to vector<8xf32>
    %38 = vector.shape_cast %37 : vector<8xf32> to vector<8x1xf32>
    %39 = vector.broadcast %38 : vector<8x1xf32> to vector<8x8xf32>
    %40 = arith.subf %36, %39 : vector<8x8xf32>
    %41 = math.exp %40 : vector<8x8xf32>
    %cst_33 = arith.constant dense<0.000000e+00> : vector<8xf32>
    %42 = vector.multi_reduction <add>, %41, %cst_33 [1] : vector<8x8xf32> to vector<8xf32>
    %43 = vector.shape_cast %42 : vector<8xf32> to vector<8x1xf32>
    %44 = tpu.reciprocal %43 {approx = true} : vector<8x1xf32> -> vector<8x1xf32>
    %45 = vector.broadcast %44 : vector<8x1xf32> to vector<8x8xf32>
    %46 = arith.mulf %41, %45 : vector<8x8xf32>
    %47 = arith.truncf %46 : vector<8x8xf32> to vector<8x8xbf16>
    %48 = arith.truncf %32 : vector<8x8xf32> to vector<8x8xbf16>
    %cst_34 = arith.constant dense<0.000000e+00> : vector<8x8xf32>
    %49 = tpu.matmul %47, %48, %cst_34 {dimension_numbers = #tpu.dot_dimension_numbers<[1], [0], [0], [1], [0, 0, 1, 1], [], []>} : vector<8x8xbf16>, vector<8x8xbf16>, vector<8x8xf32> -> vector<8x8xf32>
    %50 = arith.truncf %49 : vector<8x8xf32> to vector<8x8xbf16>
    %c0_35 = arith.constant 0 : index
    %c0_36 = arith.constant 0 : index
    %c0_37 = arith.constant 0 : index
    %51 = vector.load %arg10[%c0_35, %c0_36, %c0_37] : memref<4x8x32xbf16, #tpu.memory_space<vmem>>, vector<1x8x32xbf16>
    %52 = vector.shape_cast %51 : vector<1x8x32xbf16> to vector<8x32xbf16>
    %cst_38 = arith.constant dense<0.000000e+00> : vector<8x32xf32>
    %53 = tpu.matmul %50, %52, %cst_38 {dimension_numbers = #tpu.dot_dimension_numbers<[1], [0], [0], [1], [0, 0, 1, 1], [], []>} : vector<8x8xbf16>, vector<8x32xbf16>, vector<8x32xf32> -> vector<8x32xf32>
    %54 = arith.addf %11, %53 : vector<8x32xf32>
    %c1 = arith.constant 1 : index
    %c0_39 = arith.constant 0 : index
    %c0_40 = arith.constant 0 : index
    %55 = vector.load %arg4[%c1, %c0_39, %c0_40] : memref<4x32x8xbf16, #tpu.memory_space<vmem>>, vector<1x32x8xbf16>
    %56 = vector.shape_cast %55 : vector<1x32x8xbf16> to vector<32x8xbf16>
    %cst_41 = arith.constant dense<0.000000e+00> : vector<8x8xf32>
    %57 = tpu.matmul %2, %56, %cst_41 {dimension_numbers = #tpu.dot_dimension_numbers<[1], [0], [0], [1], [0, 0, 1, 1], [], []>} : vector<8x32xbf16>, vector<32x8xbf16>, vector<8x8xf32> -> vector<8x8xf32>
    %c1_42 = arith.constant 1 : index
    %c0_43 = arith.constant 0 : index
    %c0_44 = arith.constant 0 : index
    %58 = vector.load %arg5[%c1_42, %c0_43, %c0_44] : memref<4x1x8xf32, #tpu.memory_space<vmem>>, vector<1x1x8xf32>
    %59 = vector.shape_cast %58 : vector<1x1x8xf32> to vector<1x8xf32>
    %60 = vector.broadcast %59 : vector<1x8xf32> to vector<8x8xf32>
    %61 = arith.addf %57, %60 : vector<8x8xf32>
    %c1_45 = arith.constant 1 : index
    %c0_46 = arith.constant 0 : index
    %c0_47 = arith.constant 0 : index
    %62 = vector.load %arg6[%c1_45, %c0_46, %c0_47] : memref<4x32x8xbf16, #tpu.memory_space<vmem>>, vector<1x32x8xbf16>
    %63 = vector.shape_cast %62 : vector<1x32x8xbf16> to vector<32x8xbf16>
    %cst_48 = arith.constant dense<0.000000e+00> : vector<8x8xf32>
    %64 = tpu.matmul %5, %63, %cst_48 {dimension_numbers = #tpu.dot_dimension_numbers<[1], [0], [0], [1], [0, 0, 1, 1], [], []>} : vector<8x32xbf16>, vector<32x8xbf16>, vector<8x8xf32> -> vector<8x8xf32>
    %c1_49 = arith.constant 1 : index
    %c0_50 = arith.constant 0 : index
    %c0_51 = arith.constant 0 : index
    %65 = vector.load %arg7[%c1_49, %c0_50, %c0_51] : memref<4x1x8xf32, #tpu.memory_space<vmem>>, vector<1x1x8xf32>
    %66 = vector.shape_cast %65 : vector<1x1x8xf32> to vector<1x8xf32>
    %67 = vector.broadcast %66 : vector<1x8xf32> to vector<8x8xf32>
    %68 = arith.addf %64, %67 : vector<8x8xf32>
    %c1_52 = arith.constant 1 : index
    %c0_53 = arith.constant 0 : index
    %c0_54 = arith.constant 0 : index
    %69 = vector.load %arg8[%c1_52, %c0_53, %c0_54] : memref<4x32x8xbf16, #tpu.memory_space<vmem>>, vector<1x32x8xbf16>
    %70 = vector.shape_cast %69 : vector<1x32x8xbf16> to vector<32x8xbf16>
    %cst_55 = arith.constant dense<0.000000e+00> : vector<8x8xf32>
    %71 = tpu.matmul %5, %70, %cst_55 {dimension_numbers = #tpu.dot_dimension_numbers<[1], [0], [0], [1], [0, 0, 1, 1], [], []>} : vector<8x32xbf16>, vector<32x8xbf16>, vector<8x8xf32> -> vector<8x8xf32>
    %c1_56 = arith.constant 1 : index
    %c0_57 = arith.constant 0 : index
    %c0_58 = arith.constant 0 : index
    %72 = vector.load %arg9[%c1_56, %c0_57, %c0_58] : memref<4x1x8xf32, #tpu.memory_space<vmem>>, vector<1x1x8xf32>
    %73 = vector.shape_cast %72 : vector<1x1x8xf32> to vector<1x8xf32>
    %74 = vector.broadcast %73 : vector<1x8xf32> to vector<8x8xf32>
    %75 = arith.addf %71, %74 : vector<8x8xf32>
    %76 = arith.truncf %61 : vector<8x8xf32> to vector<8x8xbf16>
    %77 = arith.truncf %68 : vector<8x8xf32> to vector<8x8xbf16>
    %cst_59 = arith.constant dense<0.000000e+00> : vector<8x8xf32>
    %78 = tpu.matmul %76, %77, %cst_59 {dimension_numbers = #tpu.dot_dimension_numbers<[1], [1], [0], [0], [0, 0, 1, 0], [], []>} : vector<8x8xbf16>, vector<8x8xbf16>, vector<8x8xf32> -> vector<8x8xf32>
    %79 = arith.addf %78, %7 : vector<8x8xf32>
    %cst_60 = arith.constant dense<0xFF800000> : vector<8xf32>
    %80 = vector.multi_reduction <maximumf>, %79, %cst_60 [1] : vector<8x8xf32> to vector<8xf32>
    %81 = vector.shape_cast %80 : vector<8xf32> to vector<8x1xf32>
    %82 = vector.broadcast %81 : vector<8x1xf32> to vector<8x8xf32>
    %83 = arith.subf %79, %82 : vector<8x8xf32>
    %84 = math.exp %83 : vector<8x8xf32>
    %cst_61 = arith.constant dense<0.000000e+00> : vector<8xf32>
    %85 = vector.multi_reduction <add>, %84, %cst_61 [1] : vector<8x8xf32> to vector<8xf32>
    %86 = vector.shape_cast %85 : vector<8xf32> to vector<8x1xf32>
    %87 = tpu.reciprocal %86 {approx = true} : vector<8x1xf32> -> vector<8x1xf32>
    %88 = vector.broadcast %87 : vector<8x1xf32> to vector<8x8xf32>
    %89 = arith.mulf %84, %88 : vector<8x8xf32>
    %90 = arith.truncf %89 : vector<8x8xf32> to vector<8x8xbf16>
    %91 = arith.truncf %75 : vector<8x8xf32> to vector<8x8xbf16>
    %cst_62 = arith.constant dense<0.000000e+00> : vector<8x8xf32>
    %92 = tpu.matmul %90, %91, %cst_62 {dimension_numbers = #tpu.dot_dimension_numbers<[1], [0], [0], [1], [0, 0, 1, 1], [], []>} : vector<8x8xbf16>, vector<8x8xbf16>, vector<8x8xf32> -> vector<8x8xf32>
    %93 = arith.truncf %92 : vector<8x8xf32> to vector<8x8xbf16>
    %c1_63 = arith.constant 1 : index
    %c0_64 = arith.constant 0 : index
    %c0_65 = arith.constant 0 : index
    %94 = vector.load %arg10[%c1_63, %c0_64, %c0_65] : memref<4x8x32xbf16, #tpu.memory_space<vmem>>, vector<1x8x32xbf16>
    %95 = vector.shape_cast %94 : vector<1x8x32xbf16> to vector<8x32xbf16>
    %cst_66 = arith.constant dense<0.000000e+00> : vector<8x32xf32>
    %96 = tpu.matmul %93, %95, %cst_66 {dimension_numbers = #tpu.dot_dimension_numbers<[1], [0], [0], [1], [0, 0, 1, 1], [], []>} : vector<8x8xbf16>, vector<8x32xbf16>, vector<8x32xf32> -> vector<8x32xf32>
    %97 = arith.addf %54, %96 : vector<8x32xf32>
    %c2 = arith.constant 2 : index
    %c0_67 = arith.constant 0 : index
    %c0_68 = arith.constant 0 : index
    %98 = vector.load %arg4[%c2, %c0_67, %c0_68] : memref<4x32x8xbf16, #tpu.memory_space<vmem>>, vector<1x32x8xbf16>
    %99 = vector.shape_cast %98 : vector<1x32x8xbf16> to vector<32x8xbf16>
    %cst_69 = arith.constant dense<0.000000e+00> : vector<8x8xf32>
    %100 = tpu.matmul %2, %99, %cst_69 {dimension_numbers = #tpu.dot_dimension_numbers<[1], [0], [0], [1], [0, 0, 1, 1], [], []>} : vector<8x32xbf16>, vector<32x8xbf16>, vector<8x8xf32> -> vector<8x8xf32>
    %c2_70 = arith.constant 2 : index
    %c0_71 = arith.constant 0 : index
    %c0_72 = arith.constant 0 : index
    %101 = vector.load %arg5[%c2_70, %c0_71, %c0_72] : memref<4x1x8xf32, #tpu.memory_space<vmem>>, vector<1x1x8xf32>
    %102 = vector.shape_cast %101 : vector<1x1x8xf32> to vector<1x8xf32>
    %103 = vector.broadcast %102 : vector<1x8xf32> to vector<8x8xf32>
    %104 = arith.addf %100, %103 : vector<8x8xf32>
    %c2_73 = arith.constant 2 : index
    %c0_74 = arith.constant 0 : index
    %c0_75 = arith.constant 0 : index
    %105 = vector.load %arg6[%c2_73, %c0_74, %c0_75] : memref<4x32x8xbf16, #tpu.memory_space<vmem>>, vector<1x32x8xbf16>
    %106 = vector.shape_cast %105 : vector<1x32x8xbf16> to vector<32x8xbf16>
    %cst_76 = arith.constant dense<0.000000e+00> : vector<8x8xf32>
    %107 = tpu.matmul %5, %106, %cst_76 {dimension_numbers = #tpu.dot_dimension_numbers<[1], [0], [0], [1], [0, 0, 1, 1], [], []>} : vector<8x32xbf16>, vector<32x8xbf16>, vector<8x8xf32> -> vector<8x8xf32>
    %c2_77 = arith.constant 2 : index
    %c0_78 = arith.constant 0 : index
    %c0_79 = arith.constant 0 : index
    %108 = vector.load %arg7[%c2_77, %c0_78, %c0_79] : memref<4x1x8xf32, #tpu.memory_space<vmem>>, vector<1x1x8xf32>
    %109 = vector.shape_cast %108 : vector<1x1x8xf32> to vector<1x8xf32>
    %110 = vector.broadcast %109 : vector<1x8xf32> to vector<8x8xf32>
    %111 = arith.addf %107, %110 : vector<8x8xf32>
    %c2_80 = arith.constant 2 : index
    %c0_81 = arith.constant 0 : index
    %c0_82 = arith.constant 0 : index
    %112 = vector.load %arg8[%c2_80, %c0_81, %c0_82] : memref<4x32x8xbf16, #tpu.memory_space<vmem>>, vector<1x32x8xbf16>
    %113 = vector.shape_cast %112 : vector<1x32x8xbf16> to vector<32x8xbf16>
    %cst_83 = arith.constant dense<0.000000e+00> : vector<8x8xf32>
    %114 = tpu.matmul %5, %113, %cst_83 {dimension_numbers = #tpu.dot_dimension_numbers<[1], [0], [0], [1], [0, 0, 1, 1], [], []>} : vector<8x32xbf16>, vector<32x8xbf16>, vector<8x8xf32> -> vector<8x8xf32>
    %c2_84 = arith.constant 2 : index
    %c0_85 = arith.constant 0 : index
    %c0_86 = arith.constant 0 : index
    %115 = vector.load %arg9[%c2_84, %c0_85, %c0_86] : memref<4x1x8xf32, #tpu.memory_space<vmem>>, vector<1x1x8xf32>
    %116 = vector.shape_cast %115 : vector<1x1x8xf32> to vector<1x8xf32>
    %117 = vector.broadcast %116 : vector<1x8xf32> to vector<8x8xf32>
    %118 = arith.addf %114, %117 : vector<8x8xf32>
    %119 = arith.truncf %104 : vector<8x8xf32> to vector<8x8xbf16>
    %120 = arith.truncf %111 : vector<8x8xf32> to vector<8x8xbf16>
    %cst_87 = arith.constant dense<0.000000e+00> : vector<8x8xf32>
    %121 = tpu.matmul %119, %120, %cst_87 {dimension_numbers = #tpu.dot_dimension_numbers<[1], [1], [0], [0], [0, 0, 1, 0], [], []>} : vector<8x8xbf16>, vector<8x8xbf16>, vector<8x8xf32> -> vector<8x8xf32>
    %122 = arith.addf %121, %7 : vector<8x8xf32>
    %cst_88 = arith.constant dense<0xFF800000> : vector<8xf32>
    %123 = vector.multi_reduction <maximumf>, %122, %cst_88 [1] : vector<8x8xf32> to vector<8xf32>
    %124 = vector.shape_cast %123 : vector<8xf32> to vector<8x1xf32>
    %125 = vector.broadcast %124 : vector<8x1xf32> to vector<8x8xf32>
    %126 = arith.subf %122, %125 : vector<8x8xf32>
    %127 = math.exp %126 : vector<8x8xf32>
    %cst_89 = arith.constant dense<0.000000e+00> : vector<8xf32>
    %128 = vector.multi_reduction <add>, %127, %cst_89 [1] : vector<8x8xf32> to vector<8xf32>
    %129 = vector.shape_cast %128 : vector<8xf32> to vector<8x1xf32>
    %130 = tpu.reciprocal %129 {approx = true} : vector<8x1xf32> -> vector<8x1xf32>
    %131 = vector.broadcast %130 : vector<8x1xf32> to vector<8x8xf32>
    %132 = arith.mulf %127, %131 : vector<8x8xf32>
    %133 = arith.truncf %132 : vector<8x8xf32> to vector<8x8xbf16>
    %134 = arith.truncf %118 : vector<8x8xf32> to vector<8x8xbf16>
    %cst_90 = arith.constant dense<0.000000e+00> : vector<8x8xf32>
    %135 = tpu.matmul %133, %134, %cst_90 {dimension_numbers = #tpu.dot_dimension_numbers<[1], [0], [0], [1], [0, 0, 1, 1], [], []>} : vector<8x8xbf16>, vector<8x8xbf16>, vector<8x8xf32> -> vector<8x8xf32>
    %136 = arith.truncf %135 : vector<8x8xf32> to vector<8x8xbf16>
    %c2_91 = arith.constant 2 : index
    %c0_92 = arith.constant 0 : index
    %c0_93 = arith.constant 0 : index
    %137 = vector.load %arg10[%c2_91, %c0_92, %c0_93] : memref<4x8x32xbf16, #tpu.memory_space<vmem>>, vector<1x8x32xbf16>
    %138 = vector.shape_cast %137 : vector<1x8x32xbf16> to vector<8x32xbf16>
    %cst_94 = arith.constant dense<0.000000e+00> : vector<8x32xf32>
    %139 = tpu.matmul %136, %138, %cst_94 {dimension_numbers = #tpu.dot_dimension_numbers<[1], [0], [0], [1], [0, 0, 1, 1], [], []>} : vector<8x8xbf16>, vector<8x32xbf16>, vector<8x32xf32> -> vector<8x32xf32>
    %140 = arith.addf %97, %139 : vector<8x32xf32>
    %c3 = arith.constant 3 : index
    %c0_95 = arith.constant 0 : index
    %c0_96 = arith.constant 0 : index
    %141 = vector.load %arg4[%c3, %c0_95, %c0_96] : memref<4x32x8xbf16, #tpu.memory_space<vmem>>, vector<1x32x8xbf16>
    %142 = vector.shape_cast %141 : vector<1x32x8xbf16> to vector<32x8xbf16>
    %cst_97 = arith.constant dense<0.000000e+00> : vector<8x8xf32>
    %143 = tpu.matmul %2, %142, %cst_97 {dimension_numbers = #tpu.dot_dimension_numbers<[1], [0], [0], [1], [0, 0, 1, 1], [], []>} : vector<8x32xbf16>, vector<32x8xbf16>, vector<8x8xf32> -> vector<8x8xf32>
    %c3_98 = arith.constant 3 : index
    %c0_99 = arith.constant 0 : index
    %c0_100 = arith.constant 0 : index
    %144 = vector.load %arg5[%c3_98, %c0_99, %c0_100] : memref<4x1x8xf32, #tpu.memory_space<vmem>>, vector<1x1x8xf32>
    %145 = vector.shape_cast %144 : vector<1x1x8xf32> to vector<1x8xf32>
    %146 = vector.broadcast %145 : vector<1x8xf32> to vector<8x8xf32>
    %147 = arith.addf %143, %146 : vector<8x8xf32>
    %c3_101 = arith.constant 3 : index
    %c0_102 = arith.constant 0 : index
    %c0_103 = arith.constant 0 : index
    %148 = vector.load %arg6[%c3_101, %c0_102, %c0_103] : memref<4x32x8xbf16, #tpu.memory_space<vmem>>, vector<1x32x8xbf16>
    %149 = vector.shape_cast %148 : vector<1x32x8xbf16> to vector<32x8xbf16>
    %cst_104 = arith.constant dense<0.000000e+00> : vector<8x8xf32>
    %150 = tpu.matmul %5, %149, %cst_104 {dimension_numbers = #tpu.dot_dimension_numbers<[1], [0], [0], [1], [0, 0, 1, 1], [], []>} : vector<8x32xbf16>, vector<32x8xbf16>, vector<8x8xf32> -> vector<8x8xf32>
    %c3_105 = arith.constant 3 : index
    %c0_106 = arith.constant 0 : index
    %c0_107 = arith.constant 0 : index
    %151 = vector.load %arg7[%c3_105, %c0_106, %c0_107] : memref<4x1x8xf32, #tpu.memory_space<vmem>>, vector<1x1x8xf32>
    %152 = vector.shape_cast %151 : vector<1x1x8xf32> to vector<1x8xf32>
    %153 = vector.broadcast %152 : vector<1x8xf32> to vector<8x8xf32>
    %154 = arith.addf %150, %153 : vector<8x8xf32>
    %c3_108 = arith.constant 3 : index
    %c0_109 = arith.constant 0 : index
    %c0_110 = arith.constant 0 : index
    %155 = vector.load %arg8[%c3_108, %c0_109, %c0_110] : memref<4x32x8xbf16, #tpu.memory_space<vmem>>, vector<1x32x8xbf16>
    %156 = vector.shape_cast %155 : vector<1x32x8xbf16> to vector<32x8xbf16>
    %cst_111 = arith.constant dense<0.000000e+00> : vector<8x8xf32>
    %157 = tpu.matmul %5, %156, %cst_111 {dimension_numbers = #tpu.dot_dimension_numbers<[1], [0], [0], [1], [0, 0, 1, 1], [], []>} : vector<8x32xbf16>, vector<32x8xbf16>, vector<8x8xf32> -> vector<8x8xf32>
    %c3_112 = arith.constant 3 : index
    %c0_113 = arith.constant 0 : index
    %c0_114 = arith.constant 0 : index
    %158 = vector.load %arg9[%c3_112, %c0_113, %c0_114] : memref<4x1x8xf32, #tpu.memory_space<vmem>>, vector<1x1x8xf32>
    %159 = vector.shape_cast %158 : vector<1x1x8xf32> to vector<1x8xf32>
    %160 = vector.broadcast %159 : vector<1x8xf32> to vector<8x8xf32>
    %161 = arith.addf %157, %160 : vector<8x8xf32>
    %162 = arith.truncf %147 : vector<8x8xf32> to vector<8x8xbf16>
    %163 = arith.truncf %154 : vector<8x8xf32> to vector<8x8xbf16>
    %cst_115 = arith.constant dense<0.000000e+00> : vector<8x8xf32>
    %164 = tpu.matmul %162, %163, %cst_115 {dimension_numbers = #tpu.dot_dimension_numbers<[1], [1], [0], [0], [0, 0, 1, 0], [], []>} : vector<8x8xbf16>, vector<8x8xbf16>, vector<8x8xf32> -> vector<8x8xf32>
    %165 = arith.addf %164, %7 : vector<8x8xf32>
    %cst_116 = arith.constant dense<0xFF800000> : vector<8xf32>
    %166 = vector.multi_reduction <maximumf>, %165, %cst_116 [1] : vector<8x8xf32> to vector<8xf32>
    %167 = vector.shape_cast %166 : vector<8xf32> to vector<8x1xf32>
    %168 = vector.broadcast %167 : vector<8x1xf32> to vector<8x8xf32>
    %169 = arith.subf %165, %168 : vector<8x8xf32>
    %170 = math.exp %169 : vector<8x8xf32>
    %cst_117 = arith.constant dense<0.000000e+00> : vector<8xf32>
    %171 = vector.multi_reduction <add>, %170, %cst_117 [1] : vector<8x8xf32> to vector<8xf32>
    %172 = vector.shape_cast %171 : vector<8xf32> to vector<8x1xf32>
    %173 = tpu.reciprocal %172 {approx = true} : vector<8x1xf32> -> vector<8x1xf32>
    %174 = vector.broadcast %173 : vector<8x1xf32> to vector<8x8xf32>
    %175 = arith.mulf %170, %174 : vector<8x8xf32>
    %176 = arith.truncf %175 : vector<8x8xf32> to vector<8x8xbf16>
    %177 = arith.truncf %161 : vector<8x8xf32> to vector<8x8xbf16>
    %cst_118 = arith.constant dense<0.000000e+00> : vector<8x8xf32>
    %178 = tpu.matmul %176, %177, %cst_118 {dimension_numbers = #tpu.dot_dimension_numbers<[1], [0], [0], [1], [0, 0, 1, 1], [], []>} : vector<8x8xbf16>, vector<8x8xbf16>, vector<8x8xf32> -> vector<8x8xf32>
    %179 = arith.truncf %178 : vector<8x8xf32> to vector<8x8xbf16>
    %c3_119 = arith.constant 3 : index
    %c0_120 = arith.constant 0 : index
    %c0_121 = arith.constant 0 : index
    %180 = vector.load %arg10[%c3_119, %c0_120, %c0_121] : memref<4x8x32xbf16, #tpu.memory_space<vmem>>, vector<1x8x32xbf16>
    %181 = vector.shape_cast %180 : vector<1x8x32xbf16> to vector<8x32xbf16>
    %cst_122 = arith.constant dense<0.000000e+00> : vector<8x32xf32>
    %182 = tpu.matmul %179, %181, %cst_122 {dimension_numbers = #tpu.dot_dimension_numbers<[1], [0], [0], [1], [0, 0, 1, 1], [], []>} : vector<8x8xbf16>, vector<8x32xbf16>, vector<8x32xf32> -> vector<8x32xf32>
    %183 = arith.addf %140, %182 : vector<8x32xf32>
    %c0_123 = arith.constant 0 : index
    %c0_124 = arith.constant 0 : index
    %c0_125 = arith.constant 0 : index
    %184 = vector.load %arg12[%c0_123, %c0_124, %c0_125] : memref<1x8x32xf32, #tpu.memory_space<vmem>>, vector<1x8x32xf32>
    %185 = vector.shape_cast %184 : vector<1x8x32xf32> to vector<8x32xf32>
    %186 = vector.shape_cast %183 : vector<8x32xf32> to vector<1x8x32xf32>
    tpu.vector_store %arg12[%c0_123, %c0_124, %c0_125], %186 {strides = array<i32>} : memref<1x8x32xf32, #tpu.memory_space<vmem>>, vector<1x8x32xf32>,
    return
  }
  func.func @transform_0(%arg0: i32) -> (i32, i32, i32) {
    %c0_i32 = arith.constant 0 : i32
    %c0_i32_0 = arith.constant 0 : i32
    %c0_i32_1 = arith.constant 0 : i32
    return %arg0, %c0_i32, %c0_i32_0 : i32, i32, i32
  }
  func.func @transform_1(%arg0: i32) -> (i32, i32, i32) {
    %c0_i32 = arith.constant 0 : i32
    %c0_i32_0 = arith.constant 0 : i32
    %c0_i32_1 = arith.constant 0 : i32
    return %arg0, %c0_i32, %c0_i32_0 : i32, i32, i32
  }
  func.func @transform_2(%arg0: i32) -> (i32, i32, i32) {
    %c0_i32 = arith.constant 0 : i32
    %c0_i32_0 = arith.constant 0 : i32
    %c0_i32_1 = arith.constant 0 : i32
    return %arg0, %c0_i32, %c0_i32_0 : i32, i32, i32
  }
  func.func @transform_3(%arg0: i32) -> (i32, i32, i32) {
    %c0_i32 = arith.constant 0 : i32
    %c0_i32_0 = arith.constant 0 : i32
    %c0_i32_1 = arith.constant 0 : i32
    %c0_i32_2 = arith.constant 0 : i32
    return %c0_i32, %c0_i32_0, %c0_i32_1 : i32, i32, i32
  }
  func.func @transform_4(%arg0: i32) -> (i32, i32, i32) {
    %c0_i32 = arith.constant 0 : i32
    %c0_i32_0 = arith.constant 0 : i32
    %c0_i32_1 = arith.constant 0 : i32
    %c0_i32_2 = arith.constant 0 : i32
    return %c0_i32, %c0_i32_0, %c0_i32_1 : i32, i32, i32
  }
  func.func @transform_5(%arg0: i32) -> (i32, i32, i32) {
    %c0_i32 = arith.constant 0 : i32
    %c0_i32_0 = arith.constant 0 : i32
    %c0_i32_1 = arith.constant 0 : i32
    %c0_i32_2 = arith.constant 0 : i32
    return %c0_i32, %c0_i32_0, %c0_i32_1 : i32, i32, i32
  }
  func.func @transform_6(%arg0: i32) -> (i32, i32, i32) {
    %c0_i32 = arith.constant 0 : i32
    %c0_i32_0 = arith.constant 0 : i32
    %c0_i32_1 = arith.constant 0 : i32
    %c0_i32_2 = arith.constant 0 : i32
    return %c0_i32, %c0_i32_0, %c0_i32_1 : i32, i32, i32
  }
  func.func @transform_7(%arg0: i32) -> (i32, i32, i32) {
    %c0_i32 = arith.constant 0 : i32
    %c0_i32_0 = arith.constant 0 : i32
    %c0_i32_1 = arith.constant 0 : i32
    %c0_i32_2 = arith.constant 0 : i32
    return %c0_i32, %c0_i32_0, %c0_i32_1 : i32, i32, i32
  }
  func.func @transform_8(%arg0: i32) -> (i32, i32, i32) {
    %c0_i32 = arith.constant 0 : i32
    %c0_i32_0 = arith.constant 0 : i32
    %c0_i32_1 = arith.constant 0 : i32
    %c0_i32_2 = arith.constant 0 : i32
    return %c0_i32, %c0_i32_0, %c0_i32_1 : i32, i32, i32
  }
  func.func @transform_9(%arg0: i32) -> (i32, i32, i32) {
    %c0_i32 = arith.constant 0 : i32
    %c0_i32_0 = arith.constant 0 : i32
    %c0_i32_1 = arith.constant 0 : i32
    %c0_i32_2 = arith.constant 0 : i32
    return %c0_i32, %c0_i32_0, %c0_i32_1 : i32, i32, i32
  }
  func.func @transform_10(%arg0: i32) -> (i32, i32) {
    %c0_i32 = arith.constant 0 : i32
    %c0_i32_0 = arith.constant 0 : i32
    %c0_i32_1 = arith.constant 0 : i32
    return %c0_i32, %c0_i32_0 : i32, i32
  }
  func.func @transform_11(%arg0: i32) -> (i32, i32, i32) {
    %c0_i32 = arith.constant 0 : i32
    %c0_i32_0 = arith.constant 0 : i32
    %c0_i32_1 = arith.constant 0 : i32
    return %arg0, %c0_i32, %c0_i32_0 : i32, i32, i32
  }
}

</mosaic_0001>

<llo_original>
// kernel: _lambda_.1
$region0: #{_lambda_.1}
  #allocation0 [shape = 'u32[]', space=smem, size = 0x4, offset = 0x4, fixed_abs, tag = 'smem constant byte address 0x4 - core index']
  #allocation1 [shape = 'u32[144,128]{1,0:T(1,128)}', space=vmem, size = 0x12000, scoped, tag = 'internal scratch']
  %s0 = inlined_call_operand.vmem [shape: f32[2,8,32], index: 0, kind: input, shape index: {}, may-alias: {0,1}]
  %s1 = inlined_call_operand.vmem [shape: f32[2,8,32], index: 1, kind: input, shape index: {}, may-alias: {0,1}]
  %s2 = inlined_call_operand.vmem [shape: f32[2,8,8], index: 2, kind: input, shape index: {}]
  %s3 = inlined_call_operand.vmem [shape: bf16[4,32,8], index: 3, kind: input, shape index: {}]
  %s4 = inlined_call_operand.vmem [shape: f32[4,1,8], index: 4, kind: input, shape index: {}]
  %s5 = inlined_call_operand.vmem [shape: bf16[4,32,8], index: 5, kind: input, shape index: {}]
  %s6 = inlined_call_operand.vmem [shape: f32[4,1,8], index: 6, kind: input, shape index: {}]
  %s7 = inlined_call_operand.vmem [shape: bf16[4,32,8], index: 7, kind: input, shape index: {}]
  %s8 = inlined_call_operand.vmem [shape: f32[4,1,8], index: 8, kind: input, shape index: {}]
  %s9 = inlined_call_operand.vmem [shape: bf16[4,8,32], index: 9, kind: input, shape index: {}]
  %s10 = inlined_call_operand.vmem [shape: f32[1,32], index: 10, kind: input, shape index: {}]
  %s11 = inlined_call_operand.hbm [shape: f32[2,8,32], index: 11, kind: output, shape index: {}]
  %s12 = sld [smem:[#allocation0]]
  $region77: #{_lambda_.1} parent=0
    _
  %s14 = ssub.s32 1, %s12
  %s15 = scalar_select 0, %s14, %s12
  $region1: #{_lambda_.1} parent=0
    #allocation2 [shape = 'u8[8192]{0}', space=vmem, size = 0x2000, scoped, tag = 'output window, operand 0']
    #allocation3 [shape = 's32[2]{0}', space=sflag, size = 0x8, scoped, tag = 'scoped memory for _lambda_.1']
    %16 = vsyncpa [#allocation3], 0
    %s17 = scalar_lea.sflag [#allocation3], 1
    %18 = vsyncpa %s17, 0
    loop: start=0, step=1, limit=4
    $region2: #{_lambda_.1} parent=1 // loop_pre_header
      _
    $region3: #{_lambda_.1} parent=1 // loop_header
      %s20 = sphi 0, %s24
      %p21 = scmp.ge.s32.totalorder %s20, 4
      %s30 = sphi 0, %s32
      %s33 = sphi 0, %s30
      %s34 = sphi 0, %s33
      %s50 = sphi 0, %s34
      %s56 = sphi 0, %s58
      %s59 = sphi 0, %s56
      %s60 = sphi 0, %s59
      %s76 = sphi 0, %s60
      %s82 = sphi 0, %s84
      %s85 = sphi 0, %s82
      %s86 = sphi 0, %s85
      %s102 = sphi 0, %s86
      %s106 = sphi 0, %s106
      %s108 = sphi 0, %s106
      %s109 = sphi 0, %s108
      %s123 = sphi 0, %s109
      %s127 = sphi 0, %s127
      %s129 = sphi 0, %s127
      %s130 = sphi 0, %s129
      %s144 = sphi 0, %s130
      %s148 = sphi 0, %s148
      %s150 = sphi 0, %s148
      %s151 = sphi 0, %s150
      %s165 = sphi 0, %s151
      %s169 = sphi 0, %s169
      %s171 = sphi 0, %s169
      %s172 = sphi 0, %s171
      %s186 = sphi 0, %s172
      %s190 = sphi 0, %s190
      %s192 = sphi 0, %s190
      %s193 = sphi 0, %s192
      %s207 = sphi 0, %s193
      %s211 = sphi 0, %s211
      %s213 = sphi 0, %s211
      %s214 = sphi 0, %s213
      %s228 = sphi 0, %s214
      %s232 = sphi 0, %s232
      %s234 = sphi 0, %s232
      %s235 = sphi 0, %s234
      %s249 = sphi 0, %s235
      %s253 = sphi 0, %s253
      %s255 = sphi 0, %s253
      %s256 = sphi 0, %s255
      %s270 = sphi 0, %s256
      %s276 = sphi 0, %s278
      %s279 = sphi 0, %s276
      %s280 = sphi 0, %s279
      %s296 = sphi 0, %s280
    $region4: #{_lambda_.1} parent=1 // loop_header_branch
      %23 = sbr.rel (%p21) target = $region8
    $region5: #{_lambda_.1} parent=1 // loop_body
      %s25 = ssub.s32 %s20, 1
      %s26 = ssub.s32 %s20, 2
      %s27 = sadd.s32 %s20, 1
      %s28 = ssub.s32 %s20, %s27
      %p29 = scmp.eq.s32.totalorder %s28, 0
      %s31 = sadd.s32 %s30, 1
      %s32 = scalar_select %p29, %s30, %s31
      %p35 = pneg %p29
      %p36 = scmp.eq.s32.totalorder %s20, 1
      %p37 = por %p35, %p36
      %p38 = scmp.ne.s32.totalorder %s30, %s33
      %p39 = scmp.eq.s32.totalorder %s20, 0
      %p40 = por %p38, %p39
      %p41 = scmp.ne.s32.totalorder %s30, %s33
      %p42 = scmp.eq.s32.totalorder %s25, 1
      %p43 = por %p41, %p42
      %p44 = scmp.ne.s32.totalorder %s33, %s34
      %p45 = scmp.eq.s32.totalorder %s25, 0
      %p46 = por %p44, %p45
      %p47 = scmp.ne.s32.totalorder %s33, %s34
      %p48 = scmp.eq.s32.totalorder %s26, 1
      %p49 = por %p47, %p48
      %p51 = scmp.ne.s32.totalorder %s34, %s50
      %p52 = scmp.eq.s32.totalorder %s26, 0
      %p53 = por %p51, %p52
      %s54 = ssub.s32 %s20, %s27
      %p55 = scmp.eq.s32.totalorder %s54, 0
      %s57 = sadd.s32 %s56, 1
      %s58 = scalar_select %p55, %s56, %s57
      %p61 = pneg %p55
      %p62 = scmp.eq.s32.totalorder %s20, 1
      %p63 = por %p61, %p62
      %p64 = scmp.ne.s32.totalorder %s56, %s59
      %p65 = scmp.eq.s32.totalorder %s20, 0
      %p66 = por %p64, %p65
      %p67 = scmp.ne.s32.totalorder %s56, %s59
      %p68 = scmp.eq.s32.totalorder %s25, 1
      %p69 = por %p67, %p68
      %p70 = scmp.ne.s32.totalorder %s59, %s60
      %p71 = scmp.eq.s32.totalorder %s25, 0
      %p72 = por %p70, %p71
      %p73 = scmp.ne.s32.totalorder %s59, %s60
      %p74 = scmp.eq.s32.totalorder %s26, 1
      %p75 = por %p73, %p74
      %p77 = scmp.ne.s32.totalorder %s60, %s76
      %p78 = scmp.eq.s32.totalorder %s26, 0
      %p79 = por %p77, %p78
      %s80 = ssub.s32 %s20, %s27
      %p81 = scmp.eq.s32.totalorder %s80, 0
      %s83 = sadd.s32 %s82, 1
      %s84 = scalar_select %p81, %s82, %s83
      %p87 = pneg %p81
      %p88 = scmp.eq.s32.totalorder %s20, 1
      %p89 = por %p87, %p88
      %p90 = scmp.ne.s32.totalorder %s82, %s85
      %p91 = scmp.eq.s32.totalorder %s20, 0
      %p92 = por %p90, %p91
      %p93 = scmp.ne.s32.totalorder %s82, %s85
      %p94 = scmp.eq.s32.totalorder %s25, 1
      %p95 = por %p93, %p94
      %p96 = scmp.ne.s32.totalorder %s85, %s86
      %p97 = scmp.eq.s32.totalorder %s25, 0
      %p98 = por %p96, %p97
      %p99 = scmp.ne.s32.totalorder %s85, %s86
      %p100 = scmp.eq.s32.totalorder %s26, 1
      %p101 = por %p99, %p100
      %p103 = scmp.ne.s32.totalorder %s86, %s102
      %p104 = scmp.eq.s32.totalorder %s26, 0
      %p105 = por %p103, %p104
      %s107 = sadd.s32 %s106, 1
      %p110 = scmp.eq.s32.totalorder %s20, 1
      %p111 = scmp.ne.s32.totalorder %s106, %s108
      %p112 = scmp.eq.s32.totalorder %s20, 0
      %p113 = por %p111, %p112
      %p114 = scmp.ne.s32.totalorder %s106, %s108
      %p115 = scmp.eq.s32.totalorder %s25, 1
      %p116 = por %p114, %p115
      %p117 = scmp.ne.s32.totalorder %s108, %s109
      %p118 = scmp.eq.s32.totalorder %s25, 0
      %p119 = por %p117, %p118
      %p120 = scmp.ne.s32.totalorder %s108, %s109
      %p121 = scmp.eq.s32.totalorder %s26, 1
      %p122 = por %p120, %p121
      %p124 = scmp.ne.s32.totalorder %s109, %s123
      %p125 = scmp.eq.s32.totalorder %s26, 0
      %p126 = por %p124, %p125
      %s128 = sadd.s32 %s127, 1
      %p131 = scmp.eq.s32.totalorder %s20, 1
      %p132 = scmp.ne.s32.totalorder %s127, %s129
      %p133 = scmp.eq.s32.totalorder %s20, 0
      %p134 = por %p132, %p133
      %p135 = scmp.ne.s32.totalorder %s127, %s129
      %p136 = scmp.eq.s32.totalorder %s25, 1
      %p137 = por %p135, %p136
      %p138 = scmp.ne.s32.totalorder %s129, %s130
      %p139 = scmp.eq.s32.totalorder %s25, 0
      %p140 = por %p138, %p139
      %p141 = scmp.ne.s32.totalorder %s129, %s130
      %p142 = scmp.eq.s32.totalorder %s26, 1
      %p143 = por %p141, %p142
      %p145 = scmp.ne.s32.totalorder %s130, %s144
      %p146 = scmp.eq.s32.totalorder %s26, 0
      %p147 = por %p145, %p146
      %s149 = sadd.s32 %s148, 1
      %p152 = scmp.eq.s32.totalorder %s20, 1
      %p153 = scmp.ne.s32.totalorder %s148, %s150
      %p154 = scmp.eq.s32.totalorder %s20, 0
      %p155 = por %p153, %p154
      %p156 = scmp.ne.s32.totalorder %s148, %s150
      %p157 = scmp.eq.s32.totalorder %s25, 1
      %p158 = por %p156, %p157
      %p159 = scmp.ne.s32.totalorder %s150, %s151
      %p160 = scmp.eq.s32.totalorder %s25, 0
      %p161 = por %p159, %p160
      %p162 = scmp.ne.s32.totalorder %s150, %s151
      %p163 = scmp.eq.s32.totalorder %s26, 1
      %p164 = por %p162, %p163
      %p166 = scmp.ne.s32.totalorder %s151, %s165
      %p167 = scmp.eq.s32.totalorder %s26, 0
      %p168 = por %p166, %p167
      %s170 = sadd.s32 %s169, 1
      %p173 = scmp.eq.s32.totalorder %s20, 1
      %p174 = scmp.ne.s32.totalorder %s169, %s171
      %p175 = scmp.eq.s32.totalorder %s20, 0
      %p176 = por %p174, %p175
      %p177 = scmp.ne.s32.totalorder %s169, %s171
      %p178 = scmp.eq.s32.totalorder %s25, 1
      %p179 = por %p177, %p178
      %p180 = scmp.ne.s32.totalorder %s171, %s172
      %p181 = scmp.eq.s32.totalorder %s25, 0
      %p182 = por %p180, %p181
      %p183 = scmp.ne.s32.totalorder %s171, %s172
      %p184 = scmp.eq.s32.totalorder %s26, 1
      %p185 = por %p183, %p184
      %p187 = scmp.ne.s32.totalorder %s172, %s186
      %p188 = scmp.eq.s32.totalorder %s26, 0
      %p189 = por %p187, %p188
      %s191 = sadd.s32 %s190, 1
      %p194 = scmp.eq.s32.totalorder %s20, 1
      %p195 = scmp.ne.s32.totalorder %s190, %s192
      %p196 = scmp.eq.s32.totalorder %s20, 0
      %p197 = por %p195, %p196
      %p198 = scmp.ne.s32.totalorder %s190, %s192
      %p199 = scmp.eq.s32.totalorder %s25, 1
      %p200 = por %p198, %p199
      %p201 = scmp.ne.s32.totalorder %s192, %s193
      %p202 = scmp.eq.s32.totalorder %s25, 0
      %p203 = por %p201, %p202
      %p204 = scmp.ne.s32.totalorder %s192, %s193
      %p205 = scmp.eq.s32.totalorder %s26, 1
      %p206 = por %p204, %p205
      %p208 = scmp.ne.s32.totalorder %s193, %s207
      %p209 = scmp.eq.s32.totalorder %s26, 0
      %p210 = por %p208, %p209
      %s212 = sadd.s32 %s211, 1
      %p215 = scmp.eq.s32.totalorder %s20, 1
      %p216 = scmp.ne.s32.totalorder %s211, %s213
      %p217 = scmp.eq.s32.totalorder %s20, 0
      %p218 = por %p216, %p217
      %p219 = scmp.ne.s32.totalorder %s211, %s213
      %p220 = scmp.eq.s32.totalorder %s25, 1
      %p221 = por %p219, %p220
      %p222 = scmp.ne.s32.totalorder %s213, %s214
      %p223 = scmp.eq.s32.totalorder %s25, 0
      %p224 = por %p222, %p223
      %p225 = scmp.ne.s32.totalorder %s213, %s214
      %p226 = scmp.eq.s32.totalorder %s26, 1
      %p227 = por %p225, %p226
      %p229 = scmp.ne.s32.totalorder %s214, %s228
      %p230 = scmp.eq.s32.totalorder %s26, 0
      %p231 = por %p229, %p230
      %s233 = sadd.s32 %s232, 1
      %p236 = scmp.eq.s32.totalorder %s20, 1
      %p237 = scmp.ne.s32.totalorder %s232, %s234
      %p238 = scmp.eq.s32.totalorder %s20, 0
      %p239 = por %p237, %p238
      %p240 = scmp.ne.s32.totalorder %s232, %s234
      %p241 = scmp.eq.s32.totalorder %s25, 1
      %p242 = por %p240, %p241
      %p243 = scmp.ne.s32.totalorder %s234, %s235
      %p244 = scmp.eq.s32.totalorder %s25, 0
      %p245 = por %p243, %p244
      %p246 = scmp.ne.s32.totalorder %s234, %s235
      %p247 = scmp.eq.s32.totalorder %s26, 1
      %p248 = por %p246, %p247
      %p250 = scmp.ne.s32.totalorder %s235, %s249
      %p251 = scmp.eq.s32.totalorder %s26, 0
      %p252 = por %p250, %p251
      %s254 = sadd.s32 %s253, 1
      %p257 = scmp.eq.s32.totalorder %s20, 1
      %p258 = scmp.ne.s32.totalorder %s253, %s255
      %p259 = scmp.eq.s32.totalorder %s20, 0
      %p260 = por %p258, %p259
      %p261 = scmp.ne.s32.totalorder %s253, %s255
      %p262 = scmp.eq.s32.totalorder %s25, 1
      %p263 = por %p261, %p262
      %p264 = scmp.ne.s32.totalorder %s255, %s256
      %p265 = scmp.eq.s32.totalorder %s25, 0
      %p266 = por %p264, %p265
      %p267 = scmp.ne.s32.totalorder %s255, %s256
      %p268 = scmp.eq.s32.totalorder %s26, 1
      %p269 = por %p267, %p268
      %p271 = scmp.ne.s32.totalorder %s256, %s270
      %p272 = scmp.eq.s32.totalorder %s26, 0
      %p273 = por %p271, %p272
      %s274 = ssub.s32 %s20, %s27
      %p275 = scmp.eq.s32.totalorder %s274, 0
      %s277 = sadd.s32 %s276, 1
      %s278 = scalar_select %p275, %s276, %s277
      %p281 = pneg %p275
      %p282 = scmp.eq.s32.totalorder %s20, 1
      %p283 = por %p281, %p282
      %p284 = scmp.ne.s32.totalorder %s276, %s279
      %p285 = scmp.eq.s32.totalorder %s20, 0
      %p286 = por %p284, %p285
      %p287 = scmp.ne.s32.totalorder %s276, %s279
      %p288 = scmp.eq.s32.totalorder %s25, 1
      %p289 = por %p287, %p288
      %p290 = scmp.ne.s32.totalorder %s279, %s280
      %p291 = scmp.eq.s32.totalorder %s25, 0
      %p292 = por %p290, %p291
      %p293 = scmp.ne.s32.totalorder %s279, %s280
      %p294 = scmp.eq.s32.totalorder %s26, 1
      %p295 = por %p293, %p294
      %p297 = scmp.ne.s32.totalorder %s280, %s296
      %p298 = scmp.eq.s32.totalorder %s26, 0
      %p299 = por %p297, %p298
      %p300 = scmp.le.s32.totalorder 1, %s20
      %p301 = scmp.lt.s32.totalorder %s20, 3
      %p302 = pnand %p300, %p301
      %p303 = pneg %p302
      // Predicated region
      $region9: #{_lambda_.1} parent=5 // pred_check
        _
      $region10: #{_lambda_.1} parent=5 // pred_check_branch
        %305 = sbr.rel (%p302) target = $region12
      $region11: #{_lambda_.1} parent=5 // pred_region
        %s306 = ssub.s32 %s20, 1
        // Predicated region
        $region13: #{_lambda_.1} parent=11 // pred_check
          %p307 = pneg %p119
        $region14: #{_lambda_.1} parent=11 // pred_check_branch
          %309 = sbr.rel (%p307) target = $region16
        $region15: #{_lambda_.1} parent=11 // pred_region
          _
        $region16: #{_lambda_.1} parent=11 // pred_fallthru
          _
        // Predicated region
        $region17: #{_lambda_.1} parent=11 // pred_check
          %p310 = pneg %p140
        $region18: #{_lambda_.1} parent=11 // pred_check_branch
          %312 = sbr.rel (%p310) target = $region20
        $region19: #{_lambda_.1} parent=11 // pred_region
          _
        $region20: #{_lambda_.1} parent=11 // pred_fallthru
          _
        // Predicated region
        $region21: #{_lambda_.1} parent=11 // pred_check
          %p313 = pneg %p161
        $region22: #{_lambda_.1} parent=11 // pred_check_branch
          %315 = sbr.rel (%p313) target = $region24
        $region23: #{_lambda_.1} parent=11 // pred_region
          _
        $region24: #{_lambda_.1} parent=11 // pred_fallthru
          _
        // Predicated region
        $region25: #{_lambda_.1} parent=11 // pred_check
          %p316 = pneg %p182
        $region26: #{_lambda_.1} parent=11 // pred_check_branch
          %318 = sbr.rel (%p316) target = $region28
        $region27: #{_lambda_.1} parent=11 // pred_region
          _
        $region28: #{_lambda_.1} parent=11 // pred_fallthru
          _
        // Predicated region
        $region29: #{_lambda_.1} parent=11 // pred_check
          %p319 = pneg %p203
        $region30: #{_lambda_.1} parent=11 // pred_check_branch
          %321 = sbr.rel (%p319) target = $region32
        $region31: #{_lambda_.1} parent=11 // pred_region
          _
        $region32: #{_lambda_.1} parent=11 // pred_fallthru
          _
        // Predicated region
        $region33: #{_lambda_.1} parent=11 // pred_check
          %p322 = pneg %p224
        $region34: #{_lambda_.1} parent=11 // pred_check_branch
          %324 = sbr.rel (%p322) target = $region36
        $region35: #{_lambda_.1} parent=11 // pred_region
          _
        $region36: #{_lambda_.1} parent=11 // pred_fallthru
          _
        // Predicated region
        $region37: #{_lambda_.1} parent=11 // pred_check
          %p325 = pneg %p245
        $region38: #{_lambda_.1} parent=11 // pred_check_branch
          %327 = sbr.rel (%p325) target = $region40
        $region39: #{_lambda_.1} parent=11 // pred_region
          _
        $region40: #{_lambda_.1} parent=11 // pred_fallthru
          _
        // Predicated region
        $region41: #{_lambda_.1} parent=11 // pred_check
          %p328 = pneg %p266
        $region42: #{_lambda_.1} parent=11 // pred_check_branch
          %330 = sbr.rel (%p328) target = $region44
        $region43: #{_lambda_.1} parent=11 // pred_region
          _
        $region44: #{_lambda_.1} parent=11 // pred_fallthru
          _
      $region12: #{_lambda_.1} parent=5 // pred_fallthru
        _
      %p331 = scmp.lt.s32.totalorder %s20, 2
      // Predicated region
      $region45: #{_lambda_.1} parent=5 // pred_check
        %p332 = pneg %p331
      $region46: #{_lambda_.1} parent=5 // pred_check_branch
        %334 = sbr.rel (%p332) target = $region48
      $region47: #{_lambda_.1} parent=5 // pred_region
        // Predicated region
        $region49: #{_lambda_.1} parent=47 // pred_check
          %p335 = pneg %p40
        $region50: #{_lambda_.1} parent=47 // pred_check_branch
          %337 = sbr.rel (%p335) target = $region52
        $region51: #{_lambda_.1} parent=47 // pred_region
          %p338 = scmp.lt.s32.totalorder %s20, 1
          %s339 = scalar_select %p338, %s20, 1
          %s340 = smul.addr %s339, 8
          %s341 = scalar_lea.vmem %s0, %s340
        $region52: #{_lambda_.1} parent=47 // pred_fallthru
          _
        // Predicated region
        $region53: #{_lambda_.1} parent=47 // pred_check
          %p342 = pneg %p66
        $region54: #{_lambda_.1} parent=47 // pred_check_branch
          %344 = sbr.rel (%p342) target = $region56
        $region55: #{_lambda_.1} parent=47 // pred_region
          %p345 = scmp.lt.s32.totalorder %s20, 1
          %s346 = scalar_select %p345, %s20, 1
          %s347 = smul.addr %s346, 8
          %s348 = scalar_lea.vmem %s1, %s347
        $region56: #{_lambda_.1} parent=47 // pred_fallthru
          _
        // Predicated region
        $region57: #{_lambda_.1} parent=47 // pred_check
          %p349 = pneg %p92
        $region58: #{_lambda_.1} parent=47 // pred_check_branch
          %351 = sbr.rel (%p349) target = $region60
        $region59: #{_lambda_.1} parent=47 // pred_region
          %p352 = scmp.lt.s32.totalorder %s20, 1
          %s353 = scalar_select %p352, %s20, 1
          %s354 = smul.addr %s353, 8
          %s355 = scalar_lea.vmem %s2, %s354
        $region60: #{_lambda_.1} parent=47 // pred_fallthru
          _
      $region48: #{_lambda_.1} parent=5 // pred_fallthru
        _
      %p356 = scmp.le.s32.totalorder 1, %s20
      %p357 = scmp.lt.s32.totalorder %s20, 3
      %p358 = pnand %p356, %p357
      %p359 = pneg %p358
      // Predicated region
      $region61: #{_lambda_.1} parent=5 // pred_check
        _
      $region62: #{_lambda_.1} parent=5 // pred_check_branch
        %361 = sbr.rel (%p358) target = $region64
      $region63: #{_lambda_.1} parent=5 // pred_region
        %s362 = ssub.s32 %s20, 1
        %p363 = scmp.lt.s32.totalorder %s25, 1
        %s364 = scalar_select %p363, %s25, 1
        %s365 = smul.addr %s364, 8
        %s366 = scalar_lea.vmem %s0, %s365
        %p367 = pneg %p46
        %p368 = pneg %p43
        %p369 = scmp.lt.s32.totalorder %s25, 1
        %s370 = scalar_select %p369, %s25, 1
        %s371 = smul.addr %s370, 8
        %s372 = scalar_lea.vmem %s1, %s371
        %p373 = pneg %p72
        %p374 = pneg %p69
        %p375 = scmp.lt.s32.totalorder %s25, 1
        %s376 = scalar_select %p375, %s25, 1
        %s377 = smul.addr %s376, 8
        %s378 = scalar_lea.vmem %s2, %s377
        %p379 = pneg %p98
        %p380 = pneg %p95
        %p381 = pneg %p119
        %p382 = pneg %p116
        %p383 = pneg %p140
        %p384 = pneg %p137
        %p385 = pneg %p161
        %p386 = pneg %p158
        %p387 = pneg %p182
        %p388 = pneg %p179
        %p389 = pneg %p203
        %p390 = pneg %p200
        %p391 = pneg %p224
        %p392 = pneg %p221
        %p393 = pneg %p245
        %p394 = pneg %p242
        %p395 = pneg %p266
        %p396 = pneg %p263
        %p397 = pneg %p292
        %p398 = pneg %p289
        %s399 = sand.u32 %s279, 1
        %s400 = scalar_lea.sflag [#allocation3], %s399
        %s401 = sand.u32 %s279, 1
        %s402 = smul.addr %s401, 8
        %s403 = scalar_lea.vmem [#allocation2], %s402
        %p404 = scmp.lt.s32.totalorder %s25, 1
        %s405 = scalar_select %p404, %s25, 1
        %s406 = smul.addr %s405, 8
        %s407 = scalar_lea.vmem %s0, %s406
        %p408 = scmp.lt.s32.totalorder %s25, 1
        %s409 = scalar_select %p408, %s25, 1
        %s410 = smul.addr %s409, 8
        %s411 = scalar_lea.vmem %s1, %s410
        %p412 = scmp.lt.s32.totalorder %s25, 1
        %s413 = scalar_select %p412, %s25, 1
        %s414 = smul.addr %s413, 8
        %s415 = scalar_lea.vmem %s2, %s414
        %v417 = vld [vmem:[%s407] sm:$0xff]
        %v418 = vpack.c.bf16 %v417, %v417
        %v419 = vld [vmem:[%s411] sm:$0xff]
        %v420 = vpack.c.bf16 %v419, %v419
        %v421 = vld [vmem:[%s415] sm:$0xff]
        %v422 = vld [vmem:[%s10] sm:$0x1]
        %v424 = vlaneseq
        %v425 = vshrl.u32 %v424, 7
        %v426 = vsub.s32 0, %v425
        %v427 = vrot.slane %v422, %v426
        %v429 = vadd.f32 %v427, 0.0
        %v430 = vld [vmem:[%s3] sm:$0xf]
        %v431 = vld [vmem:[%s3 + $0x4] sm:$0xf]
        %v432 = vld [vmem:[%s3 + $0x8] sm:$0xf]
        %v433 = vld [vmem:[%s3 + $0xc] sm:$0xf]
        %v434 = vld [vmem:[%s4] sm:$0x1]
        %v436 = vlaneseq
        %v437 = vshrl.u32 %v436, 7
        %v438 = vsub.s32 0, %v437
        %v439 = vrot.slane %v434, %v438
        %v445 = vunpack.c.l.b16 %v430
        %v446 = vunpack.c.l.b16 %v431
        %v447 = vunpack.c.l.b16 %v432
        %v448 = vunpack.c.l.b16 %v433
        %v449 = vpack.c.b16 %v446, %v445
        %v450 = vpack.c.b16 %v448, %v447
        %vm453 = vcmask 261120
        %v455 = vsel %vm453, %v418, 0
        %457 = vmatprep.subr.bf16.mxu0 0
        %458 = vmatpush1.bf16.msra.mxu0 0
        %459 = vmatprep.subr.bf16.mxu0 0
        %460 = vmatpush1.bf16.msra.mxu0 0
        %461 = vmatprep.subr.bf16.mxu0 0
        %462 = vmatpush1.bf16.msra.mxu0 0
        %463 = vmatprep.subr.bf16.mxu0 0
        %464 = vmatpush1.bf16.msra.mxu0 0
        %465 = vmatprep.subr.bf16.mxu0 0
        %466 = vmatpush1.bf16.msra.mxu0 0
        %467 = vmatprep.subr.bf16.mxu0 0
        %468 = vmatpush1.bf16.msra.mxu0 0
        %469 = vmatprep.subr.bf16.mxu0 0
        %470 = vmatpush1.bf16.msra.mxu0 %v450
        %471 = vmatprep.subr.bf16.mxu0 0
        %472 = vmatpush1.bf16.msra.mxu0 %v449
        %473 = vmatprep.subr.bf16.mxu0 0
        %474 = vmatpush2.bf16.msra.mxu0 0
        %475 = vmatprep.subr.bf16.mxu0 0
        %476 = vmatpush2.bf16.msra.mxu0 0
        %477 = vmatprep.subr.bf16.mxu0 0
        %478 = vmatpush2.bf16.msra.mxu0 0
        %479 = vmatprep.subr.bf16.mxu0 0
        %480 = vmatpush2.bf16.msra.mxu0 0
        %481 = vmatprep.subr.bf16.mxu0 0
        %482 = vmatpush2.bf16.msra.mxu0 0
        %483 = vmatprep.subr.bf16.mxu0 0
        %484 = vmatpush2.bf16.msra.mxu0 0
        %485 = vmatprep.subr.bf16.mxu0 0
        %486 = vmatpush2.bf16.msra.mxu0 0
        %487 = vmatprep.subr.bf16.mxu0 0
        %488 = vmatpush2.bf16.msra.mxu0 0
        %489 = vmatprep.mubr.bf16.mxu0 0
        %490 = vmatmul.mubr.bf16.gmra.mxu0 %v455
        %v491 = vpop.f32.mrf.mxu0
        %v492 = vadd.f32 %v439, %v491
        %v493 = vpop.f32.mrf.mxu0
        %v494 = vpop.f32.mrf.mxu0
        %v495 = vpop.f32.mrf.mxu0
        %496 = vdwg.mxu0
        %v497 = vld [vmem:[%s5] sm:$0xf]
        %v498 = vld [vmem:[%s5 + $0x4] sm:$0xf]
        %v499 = vld [vmem:[%s5 + $0x8] sm:$0xf]
        %v500 = vld [vmem:[%s5 + $0xc] sm:$0xf]
        %v501 = vld [vmem:[%s6] sm:$0x1]
        %v503 = vlaneseq
        %v504 = vshrl.u32 %v503, 7
        %v505 = vsub.s32 0, %v504
        %v506 = vrot.slane %v501, %v505
        %v512 = vunpack.c.l.b16 %v497
        %v513 = vunpack.c.l.b16 %v498
        %v514 = vunpack.c.l.b16 %v499
        %v515 = vunpack.c.l.b16 %v500
        %v516 = vpack.c.b16 %v513, %v512
        %v517 = vpack.c.b16 %v515, %v514
        %v521 = vsel %vm453, %v420, 0
        %523 = vmatprep.subr.bf16.mxu0 0
        %524 = vmatpush1.bf16.msra.mxu0 0
        %525 = vmatprep.subr.bf16.mxu0 0
        %526 = vmatpush1.bf16.msra.mxu0 0
        %527 = vmatprep.subr.bf16.mxu0 0
        %528 = vmatpush1.bf16.msra.mxu0 0
        %529 = vmatprep.subr.bf16.mxu0 0
        %530 = vmatpush1.bf16.msra.mxu0 0
        %531 = vmatprep.subr.bf16.mxu0 0
        %532 = vmatpush1.bf16.msra.mxu0 0
        %533 = vmatprep.subr.bf16.mxu0 0
        %534 = vmatpush1.bf16.msra.mxu0 0
        %535 = vmatprep.subr.bf16.mxu0 0
        %536 = vmatpush1.bf16.msra.mxu0 %v517
        %537 = vmatprep.subr.bf16.mxu0 0
        %538 = vmatpush1.bf16.msra.mxu0 %v516
        %539 = vmatprep.subr.bf16.mxu0 0
        %540 = vmatpush2.bf16.msra.mxu0 0
        %541 = vmatprep.subr.bf16.mxu0 0
        %542 = vmatpush2.bf16.msra.mxu0 0
        %543 = vmatprep.subr.bf16.mxu0 0
        %544 = vmatpush2.bf16.msra.mxu0 0
        %545 = vmatprep.subr.bf16.mxu0 0
        %546 = vmatpush2.bf16.msra.mxu0 0
        %547 = vmatprep.subr.bf16.mxu0 0
        %548 = vmatpush2.bf16.msra.mxu0 0
        %549 = vmatprep.subr.bf16.mxu0 0
        %550 = vmatpush2.bf16.msra.mxu0 0
        %551 = vmatprep.subr.bf16.mxu0 0
        %552 = vmatpush2.bf16.msra.mxu0 0
        %553 = vmatprep.subr.bf16.mxu0 0
        %554 = vmatpush2.bf16.msra.mxu0 0
        %555 = vmatprep.mubr.bf16.mxu0 0
        %556 = vmatmul.mubr.bf16.gmra.mxu0 %v521
        %v557 = vpop.f32.mrf.mxu0
        %v558 = vadd.f32 %v506, %v557
        %v559 = vpop.f32.mrf.mxu0
        %v560 = vpop.f32.mrf.mxu0
        %v561 = vpop.f32.mrf.mxu0
        %562 = vdwg.mxu0
        %v563 = vld [vmem:[%s7] sm:$0xf]
        %v564 = vld [vmem:[%s7 + $0x4] sm:$0xf]
        %v565 = vld [vmem:[%s7 + $0x8] sm:$0xf]
        %v566 = vld [vmem:[%s7 + $0xc] sm:$0xf]
        %v567 = vld [vmem:[%s8] sm:$0x1]
        %v569 = vlaneseq
        %v570 = vshrl.u32 %v569, 7
        %v571 = vsub.s32 0, %v570
        %v572 = vrot.slane %v567, %v571
        %v578 = vunpack.c.l.b16 %v563
        %v579 = vunpack.c.l.b16 %v564
        %v580 = vunpack.c.l.b16 %v565
        %v581 = vunpack.c.l.b16 %v566
        %v582 = vpack.c.b16 %v579, %v578
        %v583 = vpack.c.b16 %v581, %v580
        %586 = vmatprep.subr.bf16.mxu0 0
        %587 = vmatpush1.bf16.msra.mxu0 0
        %588 = vmatprep.subr.bf16.mxu0 0
        %589 = vmatpush1.bf16.msra.mxu0 0
        %590 = vmatprep.subr.bf16.mxu0 0
        %591 = vmatpush1.bf16.msra.mxu0 0
        %592 = vmatprep.subr.bf16.mxu0 0
        %593 = vmatpush1.bf16.msra.mxu0 0
        %594 = vmatprep.subr.bf16.mxu0 0
        %595 = vmatpush1.bf16.msra.mxu0 0
        %596 = vmatprep.subr.bf16.mxu0 0
        %597 = vmatpush1.bf16.msra.mxu0 0
        %598 = vmatprep.subr.bf16.mxu0 0
        %599 = vmatpush1.bf16.msra.mxu0 %v583
        %600 = vmatprep.subr.bf16.mxu0 0
        %601 = vmatpush1.bf16.msra.mxu0 %v582
        %602 = vmatprep.subr.bf16.mxu0 0
        %603 = vmatpush2.bf16.msra.mxu0 0
        %604 = vmatprep.subr.bf16.mxu0 0
        %605 = vmatpush2.bf16.msra.mxu0 0
        %606 = vmatprep.subr.bf16.mxu0 0
        %607 = vmatpush2.bf16.msra.mxu0 0
        %608 = vmatprep.subr.bf16.mxu0 0
        %609 = vmatpush2.bf16.msra.mxu0 0
        %610 = vmatprep.subr.bf16.mxu0 0
        %611 = vmatpush2.bf16.msra.mxu0 0
        %612 = vmatprep.subr.bf16.mxu0 0
        %613 = vmatpush2.bf16.msra.mxu0 0
        %614 = vmatprep.subr.bf16.mxu0 0
        %615 = vmatpush2.bf16.msra.mxu0 0
        %616 = vmatprep.subr.bf16.mxu0 0
        %617 = vmatpush2.bf16.msra.mxu0 0
        %618 = vmatprep.mubr.bf16.mxu0 0
        %619 = vmatmul.mubr.bf16.gmra.mxu0 %v521
        %v620 = vpop.f32.mrf.mxu0
        %v621 = vadd.f32 %v572, %v620
        %v622 = vpop.f32.mrf.mxu0
        %v623 = vpop.f32.mrf.mxu0
        %v624 = vpop.f32.mrf.mxu0
        %625 = vdwg.mxu0
        %v626 = vpack.c.bf16 %v492, %v492
        %v627 = vpack.c.bf16 %v558, %v558
        %vm628 = vcmask 64512
        %v630 = vsel %vm628, %v626, 0
        %v633 = vsel %vm628, %v627, 0
        %635 = vmatprep.subr.bf16.mxu0 0
        %636 = vmatpush1.bf16.xpose.msra.mxu0 0
        %637 = vmatprep.subr.bf16.mxu0 0
        %638 = vmatpush1.bf16.xpose.msra.mxu0 0
        %639 = vmatprep.subr.bf16.mxu0 0
        %640 = vmatpush1.bf16.xpose.msra.mxu0 0
        %641 = vmatprep.subr.bf16.mxu0 0
        %642 = vmatpush1.bf16.xpose.msra.mxu0 0
        %643 = vmatprep.subr.bf16.mxu0 0
        %644 = vmatpush1.bf16.xpose.msra.mxu0 0
        %645 = vmatprep.subr.bf16.mxu0 0
        %646 = vmatpush1.bf16.xpose.msra.mxu0 0
        %647 = vmatprep.subr.bf16.mxu0 0
        %648 = vmatpush1.bf16.xpose.msra.mxu0 0
        %649 = vmatprep.subr.bf16.mxu0 0
        %650 = vmatpush1.bf16.xpose.msra.mxu0 %v633
        %651 = vmatprep.subr.bf16.mxu0 0
        %652 = vmatpush2.bf16.xpose.msra.mxu0 0
        %653 = vmatprep.subr.bf16.mxu0 0
        %654 = vmatpush2.bf16.xpose.msra.mxu0 0
        %655 = vmatprep.subr.bf16.mxu0 0
        %656 = vmatpush2.bf16.xpose.msra.mxu0 0
        %657 = vmatprep.subr.bf16.mxu0 0
        %658 = vmatpush2.bf16.xpose.msra.mxu0 0
        %659 = vmatprep.subr.bf16.mxu0 0
        %660 = vmatpush2.bf16.xpose.msra.mxu0 0
        %661 = vmatprep.subr.bf16.mxu0 0
        %662 = vmatpush2.bf16.xpose.msra.mxu0 0
        %663 = vmatprep.subr.bf16.mxu0 0
        %664 = vmatpush2.bf16.xpose.msra.mxu0 0
        %665 = vmatprep.subr.bf16.mxu0 0
        %666 = vmatpush2.bf16.xpose.msra.mxu0 0
        %667 = vmatprep.mubr.bf16.mxu0 0
        %668 = vmatmul.mubr.bf16.gmra.mxu0 %v630
        %v669 = vpop.f32.mrf.mxu0
        %v670 = vadd.f32 %v421, %v669
        %v671 = vpop.f32.mrf.mxu0
        %v672 = vpop.f32.mrf.mxu0
        %v673 = vpop.f32.mrf.mxu0
        %674 = vdwg.mxu0
        %v675 = vsel %vm628, %v670, -inf
        %676 = vmax.xlane.f32.xlu0 %v675
        %v677 = vpop.xlane.xlu0 %676
        %v678 = vsub.f32 %v670, %v677
        %v679 = vmul.f32 %v678, 1.442695
        %v680 = vpow.pop %v679
        %v681 = vsel %vm628, %v680, 0.0
        %682 = vadd.xlane.f32.xlu0 %v681
        %v683 = vpop.xlane.xlu0 %682
        %v684 = vrcp.pop %v683
        %v685 = vmul.f32 %v680, %v684
        %v686 = vpack.c.bf16 %v685, %v685
        %v687 = vpack.c.bf16 %v621, %v621
        %v689 = vsel %vm628, %v686, 0
        %vm691 = vcmask 1043456
        %v693 = vsel %vm691, %v687, 0
        %695 = vmatprep.subr.bf16.mxu0 0
        %696 = vmatpush1.bf16.msra.mxu0 0
        %697 = vmatprep.subr.bf16.mxu0 0
        %698 = vmatpush1.bf16.msra.mxu0 0
        %699 = vmatprep.subr.bf16.mxu0 0
        %700 = vmatpush1.bf16.msra.mxu0 0
        %701 = vmatprep.subr.bf16.mxu0 0
        %702 = vmatpush1.bf16.msra.mxu0 0
        %703 = vmatprep.subr.bf16.mxu0 0
        %704 = vmatpush1.bf16.msra.mxu0 0
        %705 = vmatprep.subr.bf16.mxu0 0
        %706 = vmatpush1.bf16.msra.mxu0 0
        %707 = vmatprep.subr.bf16.mxu0 0
        %708 = vmatpush1.bf16.msra.mxu0 0
        %709 = vmatprep.subr.bf16.mxu0 0
        %710 = vmatpush1.bf16.msra.mxu0 %v693
        %711 = vmatprep.subr.bf16.mxu0 0
        %712 = vmatpush2.bf16.msra.mxu0 0
        %713 = vmatprep.subr.bf16.mxu0 0
        %714 = vmatpush2.bf16.msra.mxu0 0
        %715 = vmatprep.subr.bf16.mxu0 0
        %716 = vmatpush2.bf16.msra.mxu0 0
        %717 = vmatprep.subr.bf16.mxu0 0
        %718 = vmatpush2.bf16.msra.mxu0 0
        %719 = vmatprep.subr.bf16.mxu0 0
        %720 = vmatpush2.bf16.msra.mxu0 0
        %721 = vmatprep.subr.bf16.mxu0 0
        %722 = vmatpush2.bf16.msra.mxu0 0
        %723 = vmatprep.subr.bf16.mxu0 0
        %724 = vmatpush2.bf16.msra.mxu0 0
        %725 = vmatprep.subr.bf16.mxu0 0
        %726 = vmatpush2.bf16.msra.mxu0 0
        %727 = vmatprep.mubr.bf16.mxu0 0
        %728 = vmatmul.mubr.bf16.gmra.mxu0 %v689
        %v729 = vpop.f32.mrf.mxu0
        %v730 = vadd.f32 0.0, %v729
        %v731 = vpop.f32.mrf.mxu0
        %v732 = vpop.f32.mrf.mxu0
        %v733 = vpop.f32.mrf.mxu0
        %734 = vdwg.mxu0
        %v735 = vpack.c.bf16 %v730, %v730
        %v736 = vld [vmem:[%s9] sm:$0xf]
        %v738 = vsel %vm628, %v735, 0
        %v741 = vsel %vm691, %v736, 0
        %743 = vmatprep.subr.bf16.mxu0 0
        %744 = vmatpush1.bf16.msra.mxu0 0
        %745 = vmatprep.subr.bf16.mxu0 0
        %746 = vmatpush1.bf16.msra.mxu0 0
        %747 = vmatprep.subr.bf16.mxu0 0
        %748 = vmatpush1.bf16.msra.mxu0 0
        %749 = vmatprep.subr.bf16.mxu0 0
        %750 = vmatpush1.bf16.msra.mxu0 0
        %751 = vmatprep.subr.bf16.mxu0 0
        %752 = vmatpush1.bf16.msra.mxu0 0
        %753 = vmatprep.subr.bf16.mxu0 0
        %754 = vmatpush1.bf16.msra.mxu0 0
        %755 = vmatprep.subr.bf16.mxu0 0
        %756 = vmatpush1.bf16.msra.mxu0 0
        %757 = vmatprep.subr.bf16.mxu0 0
        %758 = vmatpush1.bf16.msra.mxu0 %v741
        %759 = vmatprep.subr.bf16.mxu0 0
        %760 = vmatpush2.bf16.msra.mxu0 0
        %761 = vmatprep.subr.bf16.mxu0 0
        %762 = vmatpush2.bf16.msra.mxu0 0
        %763 = vmatprep.subr.bf16.mxu0 0
        %764 = vmatpush2.bf16.msra.mxu0 0
        %765 = vmatprep.subr.bf16.mxu0 0
        %766 = vmatpush2.bf16.msra.mxu0 0
        %767 = vmatprep.subr.bf16.mxu0 0
        %768 = vmatpush2.bf16.msra.mxu0 0
        %769 = vmatprep.subr.bf16.mxu0 0
        %770 = vmatpush2.bf16.msra.mxu0 0
        %771 = vmatprep.subr.bf16.mxu0 0
        %772 = vmatpush2.bf16.msra.mxu0 0
        %773 = vmatprep.subr.bf16.mxu0 0
        %774 = vmatpush2.bf16.msra.mxu0 0
        %775 = vmatprep.mubr.bf16.mxu0 0
        %776 = vmatmul.mubr.bf16.gmra.mxu0 %v738
        %v777 = vpop.f32.mrf.mxu0
        %v778 = vadd.f32 0.0, %v777
        %v779 = vpop.f32.mrf.mxu0
        %v780 = vpop.f32.mrf.mxu0
        %v781 = vpop.f32.mrf.mxu0
        %782 = vdwg.mxu0
        %v783 = vadd.f32 %v429, %v778
        %s784 = scalar_lea.vmem %s3, 16
        %v785 = vld [vmem:[%s784] sm:$0xf]
        %v786 = vld [vmem:[%s784 + $0x4] sm:$0xf]
        %v787 = vld [vmem:[%s784 + $0x8] sm:$0xf]
        %v788 = vld [vmem:[%s784 + $0xc] sm:$0xf]
        %s789 = scalar_lea.vmem %s4, 1
        %v790 = vld [vmem:[%s789] sm:$0x1]
        %v792 = vlaneseq
        %v793 = vshrl.u32 %v792, 7
        %v794 = vsub.s32 0, %v793
        %v795 = vrot.slane %v790, %v794
        %v801 = vunpack.c.l.b16 %v785
        %v802 = vunpack.c.l.b16 %v786
        %v803 = vunpack.c.l.b16 %v787
        %v804 = vunpack.c.l.b16 %v788
        %v805 = vpack.c.b16 %v802, %v801
        %v806 = vpack.c.b16 %v804, %v803
        %809 = vmatprep.subr.bf16.mxu0 0
        %810 = vmatpush1.bf16.msra.mxu0 0
        %811 = vmatprep.subr.bf16.mxu0 0
        %812 = vmatpush1.bf16.msra.mxu0 0
        %813 = vmatprep.subr.bf16.mxu0 0
        %814 = vmatpush1.bf16.msra.mxu0 0
        %815 = vmatprep.subr.bf16.mxu0 0
        %816 = vmatpush1.bf16.msra.mxu0 0
        %817 = vmatprep.subr.bf16.mxu0 0
        %818 = vmatpush1.bf16.msra.mxu0 0
        %819 = vmatprep.subr.bf16.mxu0 0
        %820 = vmatpush1.bf16.msra.mxu0 0
        %821 = vmatprep.subr.bf16.mxu0 0
        %822 = vmatpush1.bf16.msra.mxu0 %v806
        %823 = vmatprep.subr.bf16.mxu0 0
        %824 = vmatpush1.bf16.msra.mxu0 %v805
        %825 = vmatprep.subr.bf16.mxu0 0
        %826 = vmatpush2.bf16.msra.mxu0 0
        %827 = vmatprep.subr.bf16.mxu0 0
        %828 = vmatpush2.bf16.msra.mxu0 0
        %829 = vmatprep.subr.bf16.mxu0 0
        %830 = vmatpush2.bf16.msra.mxu0 0
        %831 = vmatprep.subr.bf16.mxu0 0
        %832 = vmatpush2.bf16.msra.mxu0 0
        %833 = vmatprep.subr.bf16.mxu0 0
        %834 = vmatpush2.bf16.msra.mxu0 0
        %835 = vmatprep.subr.bf16.mxu0 0
        %836 = vmatpush2.bf16.msra.mxu0 0
        %837 = vmatprep.subr.bf16.mxu0 0
        %838 = vmatpush2.bf16.msra.mxu0 0
        %839 = vmatprep.subr.bf16.mxu0 0
        %840 = vmatpush2.bf16.msra.mxu0 0
        %841 = vmatprep.mubr.bf16.mxu0 0
        %842 = vmatmul.mubr.bf16.gmra.mxu0 %v455
        %v843 = vpop.f32.mrf.mxu0
        %v844 = vadd.f32 %v795, %v843
        %v845 = vpop.f32.mrf.mxu0
        %v846 = vpop.f32.mrf.mxu0
        %v847 = vpop.f32.mrf.mxu0
        %848 = vdwg.mxu0
        %s849 = scalar_lea.vmem %s5, 16
        %v850 = vld [vmem:[%s849] sm:$0xf]
        %v851 = vld [vmem:[%s849 + $0x4] sm:$0xf]
        %v852 = vld [vmem:[%s849 + $0x8] sm:$0xf]
        %v853 = vld [vmem:[%s849 + $0xc] sm:$0xf]
        %s854 = scalar_lea.vmem %s6, 1
        %v855 = vld [vmem:[%s854] sm:$0x1]
        %v857 = vlaneseq
        %v858 = vshrl.u32 %v857, 7
        %v859 = vsub.s32 0, %v858
        %v860 = vrot.slane %v855, %v859
        %v866 = vunpack.c.l.b16 %v850
        %v867 = vunpack.c.l.b16 %v851
        %v868 = vunpack.c.l.b16 %v852
        %v869 = vunpack.c.l.b16 %v853
        %v870 = vpack.c.b16 %v867, %v866
        %v871 = vpack.c.b16 %v869, %v868
        %874 = vmatprep.subr.bf16.mxu0 0
        %875 = vmatpush1.bf16.msra.mxu0 0
        %876 = vmatprep.subr.bf16.mxu0 0
        %877 = vmatpush1.bf16.msra.mxu0 0
        %878 = vmatprep.subr.bf16.mxu0 0
        %879 = vmatpush1.bf16.msra.mxu0 0
        %880 = vmatprep.subr.bf16.mxu0 0
        %881 = vmatpush1.bf16.msra.mxu0 0
        %882 = vmatprep.subr.bf16.mxu0 0
        %883 = vmatpush1.bf16.msra.mxu0 0
        %884 = vmatprep.subr.bf16.mxu0 0
        %885 = vmatpush1.bf16.msra.mxu0 0
        %886 = vmatprep.subr.bf16.mxu0 0
        %887 = vmatpush1.bf16.msra.mxu0 %v871
        %888 = vmatprep.subr.bf16.mxu0 0
        %889 = vmatpush1.bf16.msra.mxu0 %v870
        %890 = vmatprep.subr.bf16.mxu0 0
        %891 = vmatpush2.bf16.msra.mxu0 0
        %892 = vmatprep.subr.bf16.mxu0 0
        %893 = vmatpush2.bf16.msra.mxu0 0
        %894 = vmatprep.subr.bf16.mxu0 0
        %895 = vmatpush2.bf16.msra.mxu0 0
        %896 = vmatprep.subr.bf16.mxu0 0
        %897 = vmatpush2.bf16.msra.mxu0 0
        %898 = vmatprep.subr.bf16.mxu0 0
        %899 = vmatpush2.bf16.msra.mxu0 0
        %900 = vmatprep.subr.bf16.mxu0 0
        %901 = vmatpush2.bf16.msra.mxu0 0
        %902 = vmatprep.subr.bf16.mxu0 0
        %903 = vmatpush2.bf16.msra.mxu0 0
        %904 = vmatprep.subr.bf16.mxu0 0
        %905 = vmatpush2.bf16.msra.mxu0 0
        %906 = vmatprep.mubr.bf16.mxu0 0
        %907 = vmatmul.mubr.bf16.gmra.mxu0 %v521
        %v908 = vpop.f32.mrf.mxu0
        %v909 = vadd.f32 %v860, %v908
        %v910 = vpop.f32.mrf.mxu0
        %v911 = vpop.f32.mrf.mxu0
        %v912 = vpop.f32.mrf.mxu0
        %913 = vdwg.mxu0
        %s914 = scalar_lea.vmem %s7, 16
        %v915 = vld [vmem:[%s914] sm:$0xf]
        %v916 = vld [vmem:[%s914 + $0x4] sm:$0xf]
        %v917 = vld [vmem:[%s914 + $0x8] sm:$0xf]
        %v918 = vld [vmem:[%s914 + $0xc] sm:$0xf]
        %s919 = scalar_lea.vmem %s8, 1
        %v920 = vld [vmem:[%s919] sm:$0x1]
        %v922 = vlaneseq
        %v923 = vshrl.u32 %v922, 7
        %v924 = vsub.s32 0, %v923
        %v925 = vrot.slane %v920, %v924
        %v931 = vunpack.c.l.b16 %v915
        %v932 = vunpack.c.l.b16 %v916
        %v933 = vunpack.c.l.b16 %v917
        %v934 = vunpack.c.l.b16 %v918
        %v935 = vpack.c.b16 %v932, %v931
        %v936 = vpack.c.b16 %v934, %v933
        %939 = vmatprep.subr.bf16.mxu0 0
        %940 = vmatpush1.bf16.msra.mxu0 0
        %941 = vmatprep.subr.bf16.mxu0 0
        %942 = vmatpush1.bf16.msra.mxu0 0
        %943 = vmatprep.subr.bf16.mxu0 0
        %944 = vmatpush1.bf16.msra.mxu0 0
        %945 = vmatprep.subr.bf16.mxu0 0
        %946 = vmatpush1.bf16.msra.mxu0 0
        %947 = vmatprep.subr.bf16.mxu0 0
        %948 = vmatpush1.bf16.msra.mxu0 0
        %949 = vmatprep.subr.bf16.mxu0 0
        %950 = vmatpush1.bf16.msra.mxu0 0
        %951 = vmatprep.subr.bf16.mxu0 0
        %952 = vmatpush1.bf16.msra.mxu0 %v936
        %953 = vmatprep.subr.bf16.mxu0 0
        %954 = vmatpush1.bf16.msra.mxu0 %v935
        %955 = vmatprep.subr.bf16.mxu0 0
        %956 = vmatpush2.bf16.msra.mxu0 0
        %957 = vmatprep.subr.bf16.mxu0 0
        %958 = vmatpush2.bf16.msra.mxu0 0
        %959 = vmatprep.subr.bf16.mxu0 0
        %960 = vmatpush2.bf16.msra.mxu0 0
        %961 = vmatprep.subr.bf16.mxu0 0
        %962 = vmatpush2.bf16.msra.mxu0 0
        %963 = vmatprep.subr.bf16.mxu0 0
        %964 = vmatpush2.bf16.msra.mxu0 0
        %965 = vmatprep.subr.bf16.mxu0 0
        %966 = vmatpush2.bf16.msra.mxu0 0
        %967 = vmatprep.subr.bf16.mxu0 0
        %968 = vmatpush2.bf16.msra.mxu0 0
        %969 = vmatprep.subr.bf16.mxu0 0
        %970 = vmatpush2.bf16.msra.mxu0 0
        %971 = vmatprep.mubr.bf16.mxu0 0
        %972 = vmatmul.mubr.bf16.gmra.mxu0 %v521
        %v973 = vpop.f32.mrf.mxu0
        %v974 = vadd.f32 %v925, %v973
        %v975 = vpop.f32.mrf.mxu0
        %v976 = vpop.f32.mrf.mxu0
        %v977 = vpop.f32.mrf.mxu0
        %978 = vdwg.mxu0
        %v979 = vpack.c.bf16 %v844, %v844
        %v980 = vpack.c.bf16 %v909, %v909
        %v982 = vsel %vm628, %v979, 0
        %v985 = vsel %vm628, %v980, 0
        %987 = vmatprep.subr.bf16.mxu0 0
        %988 = vmatpush1.bf16.xpose.msra.mxu0 0
        %989 = vmatprep.subr.bf16.mxu0 0
        %990 = vmatpush1.bf16.xpose.msra.mxu0 0
        %991 = vmatprep.subr.bf16.mxu0 0
        %992 = vmatpush1.bf16.xpose.msra.mxu0 0
        %993 = vmatprep.subr.bf16.mxu0 0
        %994 = vmatpush1.bf16.xpose.msra.mxu0 0
        %995 = vmatprep.subr.bf16.mxu0 0
        %996 = vmatpush1.bf16.xpose.msra.mxu0 0
        %997 = vmatprep.subr.bf16.mxu0 0
        %998 = vmatpush1.bf16.xpose.msra.mxu0 0
        %999 = vmatprep.subr.bf16.mxu0 0
        %1000 = vmatpush1.bf16.xpose.msra.mxu0 0
        %1001 = vmatprep.subr.bf16.mxu0 0
        %1002 = vmatpush1.bf16.xpose.msra.mxu0 %v985
        %1003 = vmatprep.subr.bf16.mxu0 0
        %1004 = vmatpush2.bf16.xpose.msra.mxu0 0
        %1005 = vmatprep.subr.bf16.mxu0 0
        %1006 = vmatpush2.bf16.xpose.msra.mxu0 0
        %1007 = vmatprep.subr.bf16.mxu0 0
        %1008 = vmatpush2.bf16.xpose.msra.mxu0 0
        %1009 = vmatprep.subr.bf16.mxu0 0
        %1010 = vmatpush2.bf16.xpose.msra.mxu0 0
        %1011 = vmatprep.subr.bf16.mxu0 0
        %1012 = vmatpush2.bf16.xpose.msra.mxu0 0
        %1013 = vmatprep.subr.bf16.mxu0 0
        %1014 = vmatpush2.bf16.xpose.msra.mxu0 0
        %1015 = vmatprep.subr.bf16.mxu0 0
        %1016 = vmatpush2.bf16.xpose.msra.mxu0 0
        %1017 = vmatprep.subr.bf16.mxu0 0
        %1018 = vmatpush2.bf16.xpose.msra.mxu0 0
        %1019 = vmatprep.mubr.bf16.mxu0 0
        %1020 = vmatmul.mubr.bf16.gmra.mxu0 %v982
        %v1021 = vpop.f32.mrf.mxu0
        %v1022 = vadd.f32 %v421, %v1021
        %v1023 = vpop.f32.mrf.mxu0
        %v1024 = vpop.f32.mrf.mxu0
        %v1025 = vpop.f32.mrf.mxu0
        %1026 = vdwg.mxu0
        %v1027 = vsel %vm628, %v1022, -inf
        %1028 = vmax.xlane.f32.xlu0 %v1027
        %v1029 = vpop.xlane.xlu0 %1028
        %v1030 = vsub.f32 %v1022, %v1029
        %v1031 = vmul.f32 %v1030, 1.442695
        %v1032 = vpow.pop %v1031
        %v1033 = vsel %vm628, %v1032, 0.0
        %1034 = vadd.xlane.f32.xlu0 %v1033
        %v1035 = vpop.xlane.xlu0 %1034
        %v1036 = vrcp.pop %v1035
        %v1037 = vmul.f32 %v1032, %v1036
        %v1038 = vpack.c.bf16 %v1037, %v1037
        %v1039 = vpack.c.bf16 %v974, %v974
        %v1041 = vsel %vm628, %v1038, 0
        %v1044 = vsel %vm691, %v1039, 0
        %1046 = vmatprep.subr.bf16.mxu0 0
        %1047 = vmatpush1.bf16.msra.mxu0 0
        %1048 = vmatprep.subr.bf16.mxu0 0
        %1049 = vmatpush1.bf16.msra.mxu0 0
        %1050 = vmatprep.subr.bf16.mxu0 0
        %1051 = vmatpush1.bf16.msra.mxu0 0
        %1052 = vmatprep.subr.bf16.mxu0 0
        %1053 = vmatpush1.bf16.msra.mxu0 0
        %1054 = vmatprep.subr.bf16.mxu0 0
        %1055 = vmatpush1.bf16.msra.mxu0 0
        %1056 = vmatprep.subr.bf16.mxu0 0
        %1057 = vmatpush1.bf16.msra.mxu0 0
        %1058 = vmatprep.subr.bf16.mxu0 0
        %1059 = vmatpush1.bf16.msra.mxu0 0
        %1060 = vmatprep.subr.bf16.mxu0 0
        %1061 = vmatpush1.bf16.msra.mxu0 %v1044
        %1062 = vmatprep.subr.bf16.mxu0 0
        %1063 = vmatpush2.bf16.msra.mxu0 0
        %1064 = vmatprep.subr.bf16.mxu0 0
        %1065 = vmatpush2.bf16.msra.mxu0 0
        %1066 = vmatprep.subr.bf16.mxu0 0
        %1067 = vmatpush2.bf16.msra.mxu0 0
        %1068 = vmatprep.subr.bf16.mxu0 0
        %1069 = vmatpush2.bf16.msra.mxu0 0
        %1070 = vmatprep.subr.bf16.mxu0 0
        %1071 = vmatpush2.bf16.msra.mxu0 0
        %1072 = vmatprep.subr.bf16.mxu0 0
        %1073 = vmatpush2.bf16.msra.mxu0 0
        %1074 = vmatprep.subr.bf16.mxu0 0
        %1075 = vmatpush2.bf16.msra.mxu0 0
        %1076 = vmatprep.subr.bf16.mxu0 0
        %1077 = vmatpush2.bf16.msra.mxu0 0
        %1078 = vmatprep.mubr.bf16.mxu0 0
        %1079 = vmatmul.mubr.bf16.gmra.mxu0 %v1041
        %v1080 = vpop.f32.mrf.mxu0
        %v1081 = vadd.f32 0.0, %v1080
        %v1082 = vpop.f32.mrf.mxu0
        %v1083 = vpop.f32.mrf.mxu0
        %v1084 = vpop.f32.mrf.mxu0
        %1085 = vdwg.mxu0
        %v1086 = vpack.c.bf16 %v1081, %v1081
        %s1087 = scalar_lea.vmem %s9, 4
        %v1088 = vld [vmem:[%s1087] sm:$0xf]
        %v1090 = vsel %vm628, %v1086, 0
        %v1093 = vsel %vm691, %v1088, 0
        %1095 = vmatprep.subr.bf16.mxu0 0
        %1096 = vmatpush1.bf16.msra.mxu0 0
        %1097 = vmatprep.subr.bf16.mxu0 0
        %1098 = vmatpush1.bf16.msra.mxu0 0
        %1099 = vmatprep.subr.bf16.mxu0 0
        %1100 = vmatpush1.bf16.msra.mxu0 0
        %1101 = vmatprep.subr.bf16.mxu0 0
        %1102 = vmatpush1.bf16.msra.mxu0 0
        %1103 = vmatprep.subr.bf16.mxu0 0
        %1104 = vmatpush1.bf16.msra.mxu0 0
        %1105 = vmatprep.subr.bf16.mxu0 0
        %1106 = vmatpush1.bf16.msra.mxu0 0
        %1107 = vmatprep.subr.bf16.mxu0 0
        %1108 = vmatpush1.bf16.msra.mxu0 0
        %1109 = vmatprep.subr.bf16.mxu0 0
        %1110 = vmatpush1.bf16.msra.mxu0 %v1093
        %1111 = vmatprep.subr.bf16.mxu0 0
        %1112 = vmatpush2.bf16.msra.mxu0 0
        %1113 = vmatprep.subr.bf16.mxu0 0
        %1114 = vmatpush2.bf16.msra.mxu0 0
        %1115 = vmatprep.subr.bf16.mxu0 0
        %1116 = vmatpush2.bf16.msra.mxu0 0
        %1117 = vmatprep.subr.bf16.mxu0 0
        %1118 = vmatpush2.bf16.msra.mxu0 0
        %1119 = vmatprep.subr.bf16.mxu0 0
        %1120 = vmatpush2.bf16.msra.mxu0 0
        %1121 = vmatprep.subr.bf16.mxu0 0
        %1122 = vmatpush2.bf16.msra.mxu0 0
        %1123 = vmatprep.subr.bf16.mxu0 0
        %1124 = vmatpush2.bf16.msra.mxu0 0
        %1125 = vmatprep.subr.bf16.mxu0 0
        %1126 = vmatpush2.bf16.msra.mxu0 0
        %1127 = vmatprep.mubr.bf16.mxu0 0
        %1128 = vmatmul.mubr.bf16.gmra.mxu0 %v1090
        %v1129 = vpop.f32.mrf.mxu0
        %v1130 = vadd.f32 0.0, %v1129
        %v1131 = vpop.f32.mrf.mxu0
        %v1132 = vpop.f32.mrf.mxu0
        %v1133 = vpop.f32.mrf.mxu0
        %1134 = vdwg.mxu0
        %v1135 = vadd.f32 %v783, %v1130
        %s1136 = scalar_lea.vmem %s3, 32
        %v1137 = vld [vmem:[%s1136] sm:$0xf]
        %v1138 = vld [vmem:[%s1136 + $0x4] sm:$0xf]
        %v1139 = vld [vmem:[%s1136 + $0x8] sm:$0xf]
        %v1140 = vld [vmem:[%s1136 + $0xc] sm:$0xf]
        %s1141 = scalar_lea.vmem %s4, 2
        %v1142 = vld [vmem:[%s1141] sm:$0x1]
        %v1144 = vlaneseq
        %v1145 = vshrl.u32 %v1144, 7
        %v1146 = vsub.s32 0, %v1145
        %v1147 = vrot.slane %v1142, %v1146
        %v1153 = vunpack.c.l.b16 %v1137
        %v1154 = vunpack.c.l.b16 %v1138
        %v1155 = vunpack.c.l.b16 %v1139
        %v1156 = vunpack.c.l.b16 %v1140
        %v1157 = vpack.c.b16 %v1154, %v1153
        %v1158 = vpack.c.b16 %v1156, %v1155
        %1161 = vmatprep.subr.bf16.mxu0 0
        %1162 = vmatpush1.bf16.msra.mxu0 0
        %1163 = vmatprep.subr.bf16.mxu0 0
        %1164 = vmatpush1.bf16.msra.mxu0 0
        %1165 = vmatprep.subr.bf16.mxu0 0
        %1166 = vmatpush1.bf16.msra.mxu0 0
        %1167 = vmatprep.subr.bf16.mxu0 0
        %1168 = vmatpush1.bf16.msra.mxu0 0
        %1169 = vmatprep.subr.bf16.mxu0 0
        %1170 = vmatpush1.bf16.msra.mxu0 0
        %1171 = vmatprep.subr.bf16.mxu0 0
        %1172 = vmatpush1.bf16.msra.mxu0 0
        %1173 = vmatprep.subr.bf16.mxu0 0
        %1174 = vmatpush1.bf16.msra.mxu0 %v1158
        %1175 = vmatprep.subr.bf16.mxu0 0
        %1176 = vmatpush1.bf16.msra.mxu0 %v1157
        %1177 = vmatprep.subr.bf16.mxu0 0
        %1178 = vmatpush2.bf16.msra.mxu0 0
        %1179 = vmatprep.subr.bf16.mxu0 0
        %1180 = vmatpush2.bf16.msra.mxu0 0
        %1181 = vmatprep.subr.bf16.mxu0 0
        %1182 = vmatpush2.bf16.msra.mxu0 0
        %1183 = vmatprep.subr.bf16.mxu0 0
        %1184 = vmatpush2.bf16.msra.mxu0 0
        %1185 = vmatprep.subr.bf16.mxu0 0
        %1186 = vmatpush2.bf16.msra.mxu0 0
        %1187 = vmatprep.subr.bf16.mxu0 0
        %1188 = vmatpush2.bf16.msra.mxu0 0
        %1189 = vmatprep.subr.bf16.mxu0 0
        %1190 = vmatpush2.bf16.msra.mxu0 0
        %1191 = vmatprep.subr.bf16.mxu0 0
        %1192 = vmatpush2.bf16.msra.mxu0 0
        %1193 = vmatprep.mubr.bf16.mxu0 0
        %1194 = vmatmul.mubr.bf16.gmra.mxu0 %v455
        %v1195 = vpop.f32.mrf.mxu0
        %v1196 = vadd.f32 %v1147, %v1195
        %v1197 = vpop.f32.mrf.mxu0
        %v1198 = vpop.f32.mrf.mxu0
        %v1199 = vpop.f32.mrf.mxu0
        %1200 = vdwg.mxu0
        %s1201 = scalar_lea.vmem %s5, 32
        %v1202 = vld [vmem:[%s1201] sm:$0xf]
        %v1203 = vld [vmem:[%s1201 + $0x4] sm:$0xf]
        %v1204 = vld [vmem:[%s1201 + $0x8] sm:$0xf]
        %v1205 = vld [vmem:[%s1201 + $0xc] sm:$0xf]
        %s1206 = scalar_lea.vmem %s6, 2
        %v1207 = vld [vmem:[%s1206] sm:$0x1]
        %v1209 = vlaneseq
        %v1210 = vshrl.u32 %v1209, 7
        %v1211 = vsub.s32 0, %v1210
        %v1212 = vrot.slane %v1207, %v1211
        %v1218 = vunpack.c.l.b16 %v1202
        %v1219 = vunpack.c.l.b16 %v1203
        %v1220 = vunpack.c.l.b16 %v1204
        %v1221 = vunpack.c.l.b16 %v1205
        %v1222 = vpack.c.b16 %v1219, %v1218
        %v1223 = vpack.c.b16 %v1221, %v1220
        %1226 = vmatprep.subr.bf16.mxu0 0
        %1227 = vmatpush1.bf16.msra.mxu0 0
        %1228 = vmatprep.subr.bf16.mxu0 0
        %1229 = vmatpush1.bf16.msra.mxu0 0
        %1230 = vmatprep.subr.bf16.mxu0 0
        %1231 = vmatpush1.bf16.msra.mxu0 0
        %1232 = vmatprep.subr.bf16.mxu0 0
        %1233 = vmatpush1.bf16.msra.mxu0 0
        %1234 = vmatprep.subr.bf16.mxu0 0
        %1235 = vmatpush1.bf16.msra.mxu0 0
        %1236 = vmatprep.subr.bf16.mxu0 0
        %1237 = vmatpush1.bf16.msra.mxu0 0
        %1238 = vmatprep.subr.bf16.mxu0 0
        %1239 = vmatpush1.bf16.msra.mxu0 %v1223
        %1240 = vmatprep.subr.bf16.mxu0 0
        %1241 = vmatpush1.bf16.msra.mxu0 %v1222
        %1242 = vmatprep.subr.bf16.mxu0 0
        %1243 = vmatpush2.bf16.msra.mxu0 0
        %1244 = vmatprep.subr.bf16.mxu0 0
        %1245 = vmatpush2.bf16.msra.mxu0 0
        %1246 = vmatprep.subr.bf16.mxu0 0
        %1247 = vmatpush2.bf16.msra.mxu0 0
        %1248 = vmatprep.subr.bf16.mxu0 0
        %1249 = vmatpush2.bf16.msra.mxu0 0
        %1250 = vmatprep.subr.bf16.mxu0 0
        %1251 = vmatpush2.bf16.msra.mxu0 0
        %1252 = vmatprep.subr.bf16.mxu0 0
        %1253 = vmatpush2.bf16.msra.mxu0 0
        %1254 = vmatprep.subr.bf16.mxu0 0
        %1255 = vmatpush2.bf16.msra.mxu0 0
        %1256 = vmatprep.subr.bf16.mxu0 0
        %1257 = vmatpush2.bf16.msra.mxu0 0
        %1258 = vmatprep.mubr.bf16.mxu0 0
        %1259 = vmatmul.mubr.bf16.gmra.mxu0 %v521
        %v1260 = vpop.f32.mrf.mxu0
        %v1261 = vadd.f32 %v1212, %v1260
        %v1262 = vpop.f32.mrf.mxu0
        %v1263 = vpop.f32.mrf.mxu0
        %v1264 = vpop.f32.mrf.mxu0
        %1265 = vdwg.mxu0
        %s1266 = scalar_lea.vmem %s7, 32
        %v1267 = vld [vmem:[%s1266] sm:$0xf]
        %v1268 = vld [vmem:[%s1266 + $0x4] sm:$0xf]
        %v1269 = vld [vmem:[%s1266 + $0x8] sm:$0xf]
        %v1270 = vld [vmem:[%s1266 + $0xc] sm:$0xf]
        %s1271 = scalar_lea.vmem %s8, 2
        %v1272 = vld [vmem:[%s1271] sm:$0x1]
        %v1274 = vlaneseq
        %v1275 = vshrl.u32 %v1274, 7
        %v1276 = vsub.s32 0, %v1275
        %v1277 = vrot.slane %v1272, %v1276
        %v1283 = vunpack.c.l.b16 %v1267
        %v1284 = vunpack.c.l.b16 %v1268
        %v1285 = vunpack.c.l.b16 %v1269
        %v1286 = vunpack.c.l.b16 %v1270
        %v1287 = vpack.c.b16 %v1284, %v1283
        %v1288 = vpack.c.b16 %v1286, %v1285
        %1291 = vmatprep.subr.bf16.mxu0 0
        %1292 = vmatpush1.bf16.msra.mxu0 0
        %1293 = vmatprep.subr.bf16.mxu0 0
        %1294 = vmatpush1.bf16.msra.mxu0 0
        %1295 = vmatprep.subr.bf16.mxu0 0
        %1296 = vmatpush1.bf16.msra.mxu0 0
        %1297 = vmatprep.subr.bf16.mxu0 0
        %1298 = vmatpush1.bf16.msra.mxu0 0
        %1299 = vmatprep.subr.bf16.mxu0 0
        %1300 = vmatpush1.bf16.msra.mxu0 0
        %1301 = vmatprep.subr.bf16.mxu0 0
        %1302 = vmatpush1.bf16.msra.mxu0 0
        %1303 = vmatprep.subr.bf16.mxu0 0
        %1304 = vmatpush1.bf16.msra.mxu0 %v1288
        %1305 = vmatprep.subr.bf16.mxu0 0
        %1306 = vmatpush1.bf16.msra.mxu0 %v1287
        %1307 = vmatprep.subr.bf16.mxu0 0
        %1308 = vmatpush2.bf16.msra.mxu0 0
        %1309 = vmatprep.subr.bf16.mxu0 0
        %1310 = vmatpush2.bf16.msra.mxu0 0
        %1311 = vmatprep.subr.bf16.mxu0 0
        %1312 = vmatpush2.bf16.msra.mxu0 0
        %1313 = vmatprep.subr.bf16.mxu0 0
        %1314 = vmatpush2.bf16.msra.mxu0 0
        %1315 = vmatprep.subr.bf16.mxu0 0
        %1316 = vmatpush2.bf16.msra.mxu0 0
        %1317 = vmatprep.subr.bf16.mxu0 0
        %1318 = vmatpush2.bf16.msra.mxu0 0
        %1319 = vmatprep.subr.bf16.mxu0 0
        %1320 = vmatpush2.bf16.msra.mxu0 0
        %1321 = vmatprep.subr.bf16.mxu0 0
        %1322 = vmatpush2.bf16.msra.mxu0 0
        %1323 = vmatprep.mubr.bf16.mxu0 0
        %1324 = vmatmul.mubr.bf16.gmra.mxu0 %v521
        %v1325 = vpop.f32.mrf.mxu0
        %v1326 = vadd.f32 %v1277, %v1325
        %v1327 = vpop.f32.mrf.mxu0
        %v1328 = vpop.f32.mrf.mxu0
        %v1329 = vpop.f32.mrf.mxu0
        %1330 = vdwg.mxu0
        %v1331 = vpack.c.bf16 %v1196, %v1196
        %v1332 = vpack.c.bf16 %v1261, %v1261
        %v1334 = vsel %vm628, %v1331, 0
        %v1337 = vsel %vm628, %v1332, 0
        %1339 = vmatprep.subr.bf16.mxu0 0
        %1340 = vmatpush1.bf16.xpose.msra.mxu0 0
        %1341 = vmatprep.subr.bf16.mxu0 0
        %1342 = vmatpush1.bf16.xpose.msra.mxu0 0
        %1343 = vmatprep.subr.bf16.mxu0 0
        %1344 = vmatpush1.bf16.xpose.msra.mxu0 0
        %1345 = vmatprep.subr.bf16.mxu0 0
        %1346 = vmatpush1.bf16.xpose.msra.mxu0 0
        %1347 = vmatprep.subr.bf16.mxu0 0
        %1348 = vmatpush1.bf16.xpose.msra.mxu0 0
        %1349 = vmatprep.subr.bf16.mxu0 0
        %1350 = vmatpush1.bf16.xpose.msra.mxu0 0
        %1351 = vmatprep.subr.bf16.mxu0 0
        %1352 = vmatpush1.bf16.xpose.msra.mxu0 0
        %1353 = vmatprep.subr.bf16.mxu0 0
        %1354 = vmatpush1.bf16.xpose.msra.mxu0 %v1337
        %1355 = vmatprep.subr.bf16.mxu0 0
        %1356 = vmatpush2.bf16.xpose.msra.mxu0 0
        %1357 = vmatprep.subr.bf16.mxu0 0
        %1358 = vmatpush2.bf16.xpose.msra.mxu0 0
        %1359 = vmatprep.subr.bf16.mxu0 0
        %1360 = vmatpush2.bf16.xpose.msra.mxu0 0
        %1361 = vmatprep.subr.bf16.mxu0 0
        %1362 = vmatpush2.bf16.xpose.msra.mxu0 0
        %1363 = vmatprep.subr.bf16.mxu0 0
        %1364 = vmatpush2.bf16.xpose.msra.mxu0 0
        %1365 = vmatprep.subr.bf16.mxu0 0
        %1366 = vmatpush2.bf16.xpose.msra.mxu0 0
        %1367 = vmatprep.subr.bf16.mxu0 0
        %1368 = vmatpush2.bf16.xpose.msra.mxu0 0
        %1369 = vmatprep.subr.bf16.mxu0 0
        %1370 = vmatpush2.bf16.xpose.msra.mxu0 0
        %1371 = vmatprep.mubr.bf16.mxu0 0
        %1372 = vmatmul.mubr.bf16.gmra.mxu0 %v1334
        %v1373 = vpop.f32.mrf.mxu0
        %v1374 = vadd.f32 %v421, %v1373
        %v1375 = vpop.f32.mrf.mxu0
        %v1376 = vpop.f32.mrf.mxu0
        %v1377 = vpop.f32.mrf.mxu0
        %1378 = vdwg.mxu0
        %v1379 = vsel %vm628, %v1374, -inf
        %1380 = vmax.xlane.f32.xlu0 %v1379
        %v1381 = vpop.xlane.xlu0 %1380
        %v1382 = vsub.f32 %v1374, %v1381
        %v1383 = vmul.f32 %v1382, 1.442695
        %v1384 = vpow.pop %v1383
        %v1385 = vsel %vm628, %v1384, 0.0
        %1386 = vadd.xlane.f32.xlu0 %v1385
        %v1387 = vpop.xlane.xlu0 %1386
        %v1388 = vrcp.pop %v1387
        %v1389 = vmul.f32 %v1384, %v1388
        %v1390 = vpack.c.bf16 %v1389, %v1389
        %v1391 = vpack.c.bf16 %v1326, %v1326
        %v1393 = vsel %vm628, %v1390, 0
        %v1396 = vsel %vm691, %v1391, 0
        %1398 = vmatprep.subr.bf16.mxu0 0
        %1399 = vmatpush1.bf16.msra.mxu0 0
        %1400 = vmatprep.subr.bf16.mxu0 0
        %1401 = vmatpush1.bf16.msra.mxu0 0
        %1402 = vmatprep.subr.bf16.mxu0 0
        %1403 = vmatpush1.bf16.msra.mxu0 0
        %1404 = vmatprep.subr.bf16.mxu0 0
        %1405 = vmatpush1.bf16.msra.mxu0 0
        %1406 = vmatprep.subr.bf16.mxu0 0
        %1407 = vmatpush1.bf16.msra.mxu0 0
        %1408 = vmatprep.subr.bf16.mxu0 0
        %1409 = vmatpush1.bf16.msra.mxu0 0
        %1410 = vmatprep.subr.bf16.mxu0 0
        %1411 = vmatpush1.bf16.msra.mxu0 0
        %1412 = vmatprep.subr.bf16.mxu0 0
        %1413 = vmatpush1.bf16.msra.mxu0 %v1396
        %1414 = vmatprep.subr.bf16.mxu0 0
        %1415 = vmatpush2.bf16.msra.mxu0 0
        %1416 = vmatprep.subr.bf16.mxu0 0
        %1417 = vmatpush2.bf16.msra.mxu0 0
        %1418 = vmatprep.subr.bf16.mxu0 0
        %1419 = vmatpush2.bf16.msra.mxu0 0
        %1420 = vmatprep.subr.bf16.mxu0 0
        %1421 = vmatpush2.bf16.msra.mxu0 0
        %1422 = vmatprep.subr.bf16.mxu0 0
        %1423 = vmatpush2.bf16.msra.mxu0 0
        %1424 = vmatprep.subr.bf16.mxu0 0
        %1425 = vmatpush2.bf16.msra.mxu0 0
        %1426 = vmatprep.subr.bf16.mxu0 0
        %1427 = vmatpush2.bf16.msra.mxu0 0
        %1428 = vmatprep.subr.bf16.mxu0 0
        %1429 = vmatpush2.bf16.msra.mxu0 0
        %1430 = vmatprep.mubr.bf16.mxu0 0
        %1431 = vmatmul.mubr.bf16.gmra.mxu0 %v1393
        %v1432 = vpop.f32.mrf.mxu0
        %v1433 = vadd.f32 0.0, %v1432
        %v1434 = vpop.f32.mrf.mxu0
        %v1435 = vpop.f32.mrf.mxu0
        %v1436 = vpop.f32.mrf.mxu0
        %1437 = vdwg.mxu0
        %v1438 = vpack.c.bf16 %v1433, %v1433
        %s1439 = scalar_lea.vmem %s9, 8
        %v1440 = vld [vmem:[%s1439] sm:$0xf]
        %v1442 = vsel %vm628, %v1438, 0
        %v1445 = vsel %vm691, %v1440, 0
        %1447 = vmatprep.subr.bf16.mxu0 0
        %1448 = vmatpush1.bf16.msra.mxu0 0
        %1449 = vmatprep.subr.bf16.mxu0 0
        %1450 = vmatpush1.bf16.msra.mxu0 0
        %1451 = vmatprep.subr.bf16.mxu0 0
        %1452 = vmatpush1.bf16.msra.mxu0 0
        %1453 = vmatprep.subr.bf16.mxu0 0
        %1454 = vmatpush1.bf16.msra.mxu0 0
        %1455 = vmatprep.subr.bf16.mxu0 0
        %1456 = vmatpush1.bf16.msra.mxu0 0
        %1457 = vmatprep.subr.bf16.mxu0 0
        %1458 = vmatpush1.bf16.msra.mxu0 0
        %1459 = vmatprep.subr.bf16.mxu0 0
        %1460 = vmatpush1.bf16.msra.mxu0 0
        %1461 = vmatprep.subr.bf16.mxu0 0
        %1462 = vmatpush1.bf16.msra.mxu0 %v1445
        %1463 = vmatprep.subr.bf16.mxu0 0
        %1464 = vmatpush2.bf16.msra.mxu0 0
        %1465 = vmatprep.subr.bf16.mxu0 0
        %1466 = vmatpush2.bf16.msra.mxu0 0
        %1467 = vmatprep.subr.bf16.mxu0 0
        %1468 = vmatpush2.bf16.msra.mxu0 0
        %1469 = vmatprep.subr.bf16.mxu0 0
        %1470 = vmatpush2.bf16.msra.mxu0 0
        %1471 = vmatprep.subr.bf16.mxu0 0
        %1472 = vmatpush2.bf16.msra.mxu0 0
        %1473 = vmatprep.subr.bf16.mxu0 0
        %1474 = vmatpush2.bf16.msra.mxu0 0
        %1475 = vmatprep.subr.bf16.mxu0 0
        %1476 = vmatpush2.bf16.msra.mxu0 0
        %1477 = vmatprep.subr.bf16.mxu0 0
        %1478 = vmatpush2.bf16.msra.mxu0 0
        %1479 = vmatprep.mubr.bf16.mxu0 0
        %1480 = vmatmul.mubr.bf16.gmra.mxu0 %v1442
        %v1481 = vpop.f32.mrf.mxu0
        %v1482 = vadd.f32 0.0, %v1481
        %v1483 = vpop.f32.mrf.mxu0
        %v1484 = vpop.f32.mrf.mxu0
        %v1485 = vpop.f32.mrf.mxu0
        %1486 = vdwg.mxu0
        %v1487 = vadd.f32 %v1135, %v1482
        %s1488 = scalar_lea.vmem %s3, 48
        %v1489 = vld [vmem:[%s1488] sm:$0xf]
        %v1490 = vld [vmem:[%s1488 + $0x4] sm:$0xf]
        %v1491 = vld [vmem:[%s1488 + $0x8] sm:$0xf]
        %v1492 = vld [vmem:[%s1488 + $0xc] sm:$0xf]
        %s1493 = scalar_lea.vmem %s4, 3
        %v1494 = vld [vmem:[%s1493] sm:$0x1]
        %v1496 = vlaneseq
        %v1497 = vshrl.u32 %v1496, 7
        %v1498 = vsub.s32 0, %v1497
        %v1499 = vrot.slane %v1494, %v1498
        %v1505 = vunpack.c.l.b16 %v1489
        %v1506 = vunpack.c.l.b16 %v1490
        %v1507 = vunpack.c.l.b16 %v1491
        %v1508 = vunpack.c.l.b16 %v1492
        %v1509 = vpack.c.b16 %v1506, %v1505
        %v1510 = vpack.c.b16 %v1508, %v1507
        %1513 = vmatprep.subr.bf16.mxu0 0
        %1514 = vmatpush1.bf16.msra.mxu0 0
        %1515 = vmatprep.subr.bf16.mxu0 0
        %1516 = vmatpush1.bf16.msra.mxu0 0
        %1517 = vmatprep.subr.bf16.mxu0 0
        %1518 = vmatpush1.bf16.msra.mxu0 0
        %1519 = vmatprep.subr.bf16.mxu0 0
        %1520 = vmatpush1.bf16.msra.mxu0 0
        %1521 = vmatprep.subr.bf16.mxu0 0
        %1522 = vmatpush1.bf16.msra.mxu0 0
        %1523 = vmatprep.subr.bf16.mxu0 0
        %1524 = vmatpush1.bf16.msra.mxu0 0
        %1525 = vmatprep.subr.bf16.mxu0 0
        %1526 = vmatpush1.bf16.msra.mxu0 %v1510
        %1527 = vmatprep.subr.bf16.mxu0 0
        %1528 = vmatpush1.bf16.msra.mxu0 %v1509
        %1529 = vmatprep.subr.bf16.mxu0 0
        %1530 = vmatpush2.bf16.msra.mxu0 0
        %1531 = vmatprep.subr.bf16.mxu0 0
        %1532 = vmatpush2.bf16.msra.mxu0 0
        %1533 = vmatprep.subr.bf16.mxu0 0
        %1534 = vmatpush2.bf16.msra.mxu0 0
        %1535 = vmatprep.subr.bf16.mxu0 0
        %1536 = vmatpush2.bf16.msra.mxu0 0
        %1537 = vmatprep.subr.bf16.mxu0 0
        %1538 = vmatpush2.bf16.msra.mxu0 0
        %1539 = vmatprep.subr.bf16.mxu0 0
        %1540 = vmatpush2.bf16.msra.mxu0 0
        %1541 = vmatprep.subr.bf16.mxu0 0
        %1542 = vmatpush2.bf16.msra.mxu0 0
        %1543 = vmatprep.subr.bf16.mxu0 0
        %1544 = vmatpush2.bf16.msra.mxu0 0
        %1545 = vmatprep.mubr.bf16.mxu0 0
        %1546 = vmatmul.mubr.bf16.gmra.mxu0 %v455
        %v1547 = vpop.f32.mrf.mxu0
        %v1548 = vadd.f32 %v1499, %v1547
        %v1549 = vpop.f32.mrf.mxu0
        %v1550 = vpop.f32.mrf.mxu0
        %v1551 = vpop.f32.mrf.mxu0
        %1552 = vdwg.mxu0
        %s1553 = scalar_lea.vmem %s5, 48
        %v1554 = vld [vmem:[%s1553] sm:$0xf]
        %v1555 = vld [vmem:[%s1553 + $0x4] sm:$0xf]
        %v1556 = vld [vmem:[%s1553 + $0x8] sm:$0xf]
        %v1557 = vld [vmem:[%s1553 + $0xc] sm:$0xf]
        %s1558 = scalar_lea.vmem %s6, 3
        %v1559 = vld [vmem:[%s1558] sm:$0x1]
        %v1561 = vlaneseq
        %v1562 = vshrl.u32 %v1561, 7
        %v1563 = vsub.s32 0, %v1562
        %v1564 = vrot.slane %v1559, %v1563
        %v1570 = vunpack.c.l.b16 %v1554
        %v1571 = vunpack.c.l.b16 %v1555
        %v1572 = vunpack.c.l.b16 %v1556
        %v1573 = vunpack.c.l.b16 %v1557
        %v1574 = vpack.c.b16 %v1571, %v1570
        %v1575 = vpack.c.b16 %v1573, %v1572
        %1578 = vmatprep.subr.bf16.mxu0 0
        %1579 = vmatpush1.bf16.msra.mxu0 0
        %1580 = vmatprep.subr.bf16.mxu0 0
        %1581 = vmatpush1.bf16.msra.mxu0 0
        %1582 = vmatprep.subr.bf16.mxu0 0
        %1583 = vmatpush1.bf16.msra.mxu0 0
        %1584 = vmatprep.subr.bf16.mxu0 0
        %1585 = vmatpush1.bf16.msra.mxu0 0
        %1586 = vmatprep.subr.bf16.mxu0 0
        %1587 = vmatpush1.bf16.msra.mxu0 0
        %1588 = vmatprep.subr.bf16.mxu0 0
        %1589 = vmatpush1.bf16.msra.mxu0 0
        %1590 = vmatprep.subr.bf16.mxu0 0
        %1591 = vmatpush1.bf16.msra.mxu0 %v1575
        %1592 = vmatprep.subr.bf16.mxu0 0
        %1593 = vmatpush1.bf16.msra.mxu0 %v1574
        %1594 = vmatprep.subr.bf16.mxu0 0
        %1595 = vmatpush2.bf16.msra.mxu0 0
        %1596 = vmatprep.subr.bf16.mxu0 0
        %1597 = vmatpush2.bf16.msra.mxu0 0
        %1598 = vmatprep.subr.bf16.mxu0 0
        %1599 = vmatpush2.bf16.msra.mxu0 0
        %1600 = vmatprep.subr.bf16.mxu0 0
        %1601 = vmatpush2.bf16.msra.mxu0 0
        %1602 = vmatprep.subr.bf16.mxu0 0
        %1603 = vmatpush2.bf16.msra.mxu0 0
        %1604 = vmatprep.subr.bf16.mxu0 0
        %1605 = vmatpush2.bf16.msra.mxu0 0
        %1606 = vmatprep.subr.bf16.mxu0 0
        %1607 = vmatpush2.bf16.msra.mxu0 0
        %1608 = vmatprep.subr.bf16.mxu0 0
        %1609 = vmatpush2.bf16.msra.mxu0 0
        %1610 = vmatprep.mubr.bf16.mxu0 0
        %1611 = vmatmul.mubr.bf16.gmra.mxu0 %v521
        %v1612 = vpop.f32.mrf.mxu0
        %v1613 = vadd.f32 %v1564, %v1612
        %v1614 = vpop.f32.mrf.mxu0
        %v1615 = vpop.f32.mrf.mxu0
        %v1616 = vpop.f32.mrf.mxu0
        %1617 = vdwg.mxu0
        %s1618 = scalar_lea.vmem %s7, 48
        %v1619 = vld [vmem:[%s1618] sm:$0xf]
        %v1620 = vld [vmem:[%s1618 + $0x4] sm:$0xf]
        %v1621 = vld [vmem:[%s1618 + $0x8] sm:$0xf]
        %v1622 = vld [vmem:[%s1618 + $0xc] sm:$0xf]
        %s1623 = scalar_lea.vmem %s8, 3
        %v1624 = vld [vmem:[%s1623] sm:$0x1]
        %v1626 = vlaneseq
        %v1627 = vshrl.u32 %v1626, 7
        %v1628 = vsub.s32 0, %v1627
        %v1629 = vrot.slane %v1624, %v1628
        %v1635 = vunpack.c.l.b16 %v1619
        %v1636 = vunpack.c.l.b16 %v1620
        %v1637 = vunpack.c.l.b16 %v1621
        %v1638 = vunpack.c.l.b16 %v1622
        %v1639 = vpack.c.b16 %v1636, %v1635
        %v1640 = vpack.c.b16 %v1638, %v1637
        %1643 = vmatprep.subr.bf16.mxu0 0
        %1644 = vmatpush1.bf16.msra.mxu0 0
        %1645 = vmatprep.subr.bf16.mxu0 0
        %1646 = vmatpush1.bf16.msra.mxu0 0
        %1647 = vmatprep.subr.bf16.mxu0 0
        %1648 = vmatpush1.bf16.msra.mxu0 0
        %1649 = vmatprep.subr.bf16.mxu0 0
        %1650 = vmatpush1.bf16.msra.mxu0 0
        %1651 = vmatprep.subr.bf16.mxu0 0
        %1652 = vmatpush1.bf16.msra.mxu0 0
        %1653 = vmatprep.subr.bf16.mxu0 0
        %1654 = vmatpush1.bf16.msra.mxu0 0
        %1655 = vmatprep.subr.bf16.mxu0 0
        %1656 = vmatpush1.bf16.msra.mxu0 %v1640
        %1657 = vmatprep.subr.bf16.mxu0 0
        %1658 = vmatpush1.bf16.msra.mxu0 %v1639
        %1659 = vmatprep.subr.bf16.mxu0 0
        %1660 = vmatpush2.bf16.msra.mxu0 0
        %1661 = vmatprep.subr.bf16.mxu0 0
        %1662 = vmatpush2.bf16.msra.mxu0 0
        %1663 = vmatprep.subr.bf16.mxu0 0
        %1664 = vmatpush2.bf16.msra.mxu0 0
        %1665 = vmatprep.subr.bf16.mxu0 0
        %1666 = vmatpush2.bf16.msra.mxu0 0
        %1667 = vmatprep.subr.bf16.mxu0 0
        %1668 = vmatpush2.bf16.msra.mxu0 0
        %1669 = vmatprep.subr.bf16.mxu0 0
        %1670 = vmatpush2.bf16.msra.mxu0 0
        %1671 = vmatprep.subr.bf16.mxu0 0
        %1672 = vmatpush2.bf16.msra.mxu0 0
        %1673 = vmatprep.subr.bf16.mxu0 0
        %1674 = vmatpush2.bf16.msra.mxu0 0
        %1675 = vmatprep.mubr.bf16.mxu0 0
        %1676 = vmatmul.mubr.bf16.gmra.mxu0 %v521
        %v1677 = vpop.f32.mrf.mxu0
        %v1678 = vadd.f32 %v1629, %v1677
        %v1679 = vpop.f32.mrf.mxu0
        %v1680 = vpop.f32.mrf.mxu0
        %v1681 = vpop.f32.mrf.mxu0
        %1682 = vdwg.mxu0
        %v1683 = vpack.c.bf16 %v1548, %v1548
        %v1684 = vpack.c.bf16 %v1613, %v1613
        %v1686 = vsel %vm628, %v1683, 0
        %v1689 = vsel %vm628, %v1684, 0
        %1691 = vmatprep.subr.bf16.mxu0 0
        %1692 = vmatpush1.bf16.xpose.msra.mxu0 0
        %1693 = vmatprep.subr.bf16.mxu0 0
        %1694 = vmatpush1.bf16.xpose.msra.mxu0 0
        %1695 = vmatprep.subr.bf16.mxu0 0
        %1696 = vmatpush1.bf16.xpose.msra.mxu0 0
        %1697 = vmatprep.subr.bf16.mxu0 0
        %1698 = vmatpush1.bf16.xpose.msra.mxu0 0
        %1699 = vmatprep.subr.bf16.mxu0 0
        %1700 = vmatpush1.bf16.xpose.msra.mxu0 0
        %1701 = vmatprep.subr.bf16.mxu0 0
        %1702 = vmatpush1.bf16.xpose.msra.mxu0 0
        %1703 = vmatprep.subr.bf16.mxu0 0
        %1704 = vmatpush1.bf16.xpose.msra.mxu0 0
        %1705 = vmatprep.subr.bf16.mxu0 0
        %1706 = vmatpush1.bf16.xpose.msra.mxu0 %v1689
        %1707 = vmatprep.subr.bf16.mxu0 0
        %1708 = vmatpush2.bf16.xpose.msra.mxu0 0
        %1709 = vmatprep.subr.bf16.mxu0 0
        %1710 = vmatpush2.bf16.xpose.msra.mxu0 0
        %1711 = vmatprep.subr.bf16.mxu0 0
        %1712 = vmatpush2.bf16.xpose.msra.mxu0 0
        %1713 = vmatprep.subr.bf16.mxu0 0
        %1714 = vmatpush2.bf16.xpose.msra.mxu0 0
        %1715 = vmatprep.subr.bf16.mxu0 0
        %1716 = vmatpush2.bf16.xpose.msra.mxu0 0
        %1717 = vmatprep.subr.bf16.mxu0 0
        %1718 = vmatpush2.bf16.xpose.msra.mxu0 0
        %1719 = vmatprep.subr.bf16.mxu0 0
        %1720 = vmatpush2.bf16.xpose.msra.mxu0 0
        %1721 = vmatprep.subr.bf16.mxu0 0
        %1722 = vmatpush2.bf16.xpose.msra.mxu0 0
        %1723 = vmatprep.mubr.bf16.mxu0 0
        %1724 = vmatmul.mubr.bf16.gmra.mxu0 %v1686
        %v1725 = vpop.f32.mrf.mxu0
        %v1726 = vadd.f32 %v421, %v1725
        %v1727 = vpop.f32.mrf.mxu0
        %v1728 = vpop.f32.mrf.mxu0
        %v1729 = vpop.f32.mrf.mxu0
        %1730 = vdwg.mxu0
        %v1731 = vsel %vm628, %v1726, -inf
        %1732 = vmax.xlane.f32.xlu0 %v1731
        %v1733 = vpop.xlane.xlu0 %1732
        %v1734 = vsub.f32 %v1726, %v1733
        %v1735 = vmul.f32 %v1734, 1.442695
        %v1736 = vpow.pop %v1735
        %v1737 = vsel %vm628, %v1736, 0.0
        %1738 = vadd.xlane.f32.xlu0 %v1737
        %v1739 = vpop.xlane.xlu0 %1738
        %v1740 = vrcp.pop %v1739
        %v1741 = vmul.f32 %v1736, %v1740
        %v1742 = vpack.c.bf16 %v1741, %v1741
        %v1743 = vpack.c.bf16 %v1678, %v1678
        %v1745 = vsel %vm628, %v1742, 0
        %v1748 = vsel %vm691, %v1743, 0
        %1750 = vmatprep.subr.bf16.mxu0 0
        %1751 = vmatpush1.bf16.msra.mxu0 0
        %1752 = vmatprep.subr.bf16.mxu0 0
        %1753 = vmatpush1.bf16.msra.mxu0 0
        %1754 = vmatprep.subr.bf16.mxu0 0
        %1755 = vmatpush1.bf16.msra.mxu0 0
        %1756 = vmatprep.subr.bf16.mxu0 0
        %1757 = vmatpush1.bf16.msra.mxu0 0
        %1758 = vmatprep.subr.bf16.mxu0 0
        %1759 = vmatpush1.bf16.msra.mxu0 0
        %1760 = vmatprep.subr.bf16.mxu0 0
        %1761 = vmatpush1.bf16.msra.mxu0 0
        %1762 = vmatprep.subr.bf16.mxu0 0
        %1763 = vmatpush1.bf16.msra.mxu0 0
        %1764 = vmatprep.subr.bf16.mxu0 0
        %1765 = vmatpush1.bf16.msra.mxu0 %v1748
        %1766 = vmatprep.subr.bf16.mxu0 0
        %1767 = vmatpush2.bf16.msra.mxu0 0
        %1768 = vmatprep.subr.bf16.mxu0 0
        %1769 = vmatpush2.bf16.msra.mxu0 0
        %1770 = vmatprep.subr.bf16.mxu0 0
        %1771 = vmatpush2.bf16.msra.mxu0 0
        %1772 = vmatprep.subr.bf16.mxu0 0
        %1773 = vmatpush2.bf16.msra.mxu0 0
        %1774 = vmatprep.subr.bf16.mxu0 0
        %1775 = vmatpush2.bf16.msra.mxu0 0
        %1776 = vmatprep.subr.bf16.mxu0 0
        %1777 = vmatpush2.bf16.msra.mxu0 0
        %1778 = vmatprep.subr.bf16.mxu0 0
        %1779 = vmatpush2.bf16.msra.mxu0 0
        %1780 = vmatprep.subr.bf16.mxu0 0
        %1781 = vmatpush2.bf16.msra.mxu0 0
        %1782 = vmatprep.mubr.bf16.mxu0 0
        %1783 = vmatmul.mubr.bf16.gmra.mxu0 %v1745
        %v1784 = vpop.f32.mrf.mxu0
        %v1785 = vadd.f32 0.0, %v1784
        %v1786 = vpop.f32.mrf.mxu0
        %v1787 = vpop.f32.mrf.mxu0
        %v1788 = vpop.f32.mrf.mxu0
        %1789 = vdwg.mxu0
        %v1790 = vpack.c.bf16 %v1785, %v1785
        %s1791 = scalar_lea.vmem %s9, 12
        %v1792 = vld [vmem:[%s1791] sm:$0xf]
        %v1794 = vsel %vm628, %v1790, 0
        %v1797 = vsel %vm691, %v1792, 0
        %1799 = vmatprep.subr.bf16.mxu0 0
        %1800 = vmatpush1.bf16.msra.mxu0 0
        %1801 = vmatprep.subr.bf16.mxu0 0
        %1802 = vmatpush1.bf16.msra.mxu0 0
        %1803 = vmatprep.subr.bf16.mxu0 0
        %1804 = vmatpush1.bf16.msra.mxu0 0
        %1805 = vmatprep.subr.bf16.mxu0 0
        %1806 = vmatpush1.bf16.msra.mxu0 0
        %1807 = vmatprep.subr.bf16.mxu0 0
        %1808 = vmatpush1.bf16.msra.mxu0 0
        %1809 = vmatprep.subr.bf16.mxu0 0
        %1810 = vmatpush1.bf16.msra.mxu0 0
        %1811 = vmatprep.subr.bf16.mxu0 0
        %1812 = vmatpush1.bf16.msra.mxu0 0
        %1813 = vmatprep.subr.bf16.mxu0 0
        %1814 = vmatpush1.bf16.msra.mxu0 %v1797
        %1815 = vmatprep.subr.bf16.mxu0 0
        %1816 = vmatpush2.bf16.msra.mxu0 0
        %1817 = vmatprep.subr.bf16.mxu0 0
        %1818 = vmatpush2.bf16.msra.mxu0 0
        %1819 = vmatprep.subr.bf16.mxu0 0
        %1820 = vmatpush2.bf16.msra.mxu0 0
        %1821 = vmatprep.subr.bf16.mxu0 0
        %1822 = vmatpush2.bf16.msra.mxu0 0
        %1823 = vmatprep.subr.bf16.mxu0 0
        %1824 = vmatpush2.bf16.msra.mxu0 0
        %1825 = vmatprep.subr.bf16.mxu0 0
        %1826 = vmatpush2.bf16.msra.mxu0 0
        %1827 = vmatprep.subr.bf16.mxu0 0
        %1828 = vmatpush2.bf16.msra.mxu0 0
        %1829 = vmatprep.subr.bf16.mxu0 0
        %1830 = vmatpush2.bf16.msra.mxu0 0
        %1831 = vmatprep.mubr.bf16.mxu0 0
        %1832 = vmatmul.mubr.bf16.gmra.mxu0 %v1794
        %v1833 = vpop.f32.mrf.mxu0
        %v1834 = vadd.f32 0.0, %v1833
        %v1835 = vpop.f32.mrf.mxu0
        %v1836 = vpop.f32.mrf.mxu0
        %v1837 = vpop.f32.mrf.mxu0
        %1838 = vdwg.mxu0
        %v1839 = vadd.f32 %v1487, %v1834
        %1840 = vst.msk [vmem:[%s403] sm:$0xff] %vm453, %v1839
        %s1841 = sand.u32 %s279, 1
        %s1842 = scalar_lea.sflag [#allocation3], %s1841
        %s1843 = sand.u32 %s279, 1
        %s1844 = smul.addr %s1843, 8
        %s1845 = scalar_lea.vmem [#allocation2], %s1844
        // Predicated region
        $region65: #{_lambda_.1} parent=63 // pred_check
          %p1846 = pneg %p289
        $region66: #{_lambda_.1} parent=63 // pred_check_branch
          %1848 = sbr.rel (%p1846) target = $region68
        $region67: #{_lambda_.1} parent=63 // pred_region
          %s1850 = ssub.s32 128, 128
          %1851 = vsyncadd %s1842, %s1850
          %s1852 = smul.addr %s25, 128
          %s1853 = scalar_lea.hbm %s11, %s1852
          %s1855 = sshll.u32 %s1845, 4
          %s1856 = int_to_ptr.vmem [resolvable:$true] %s1855
          %1858 = dma.vmem_to_hbm [thread:$0]  %s1856, 128, %s1853, %s1842
        $region68: #{_lambda_.1} parent=63 // pred_fallthru
          _
      $region64: #{_lambda_.1} parent=5 // pred_fallthru
        _
      %p1859 = scmp.le.s32.totalorder 2, %s20
      // Predicated region
      $region69: #{_lambda_.1} parent=5 // pred_check
        %p1860 = pneg %p1859
      $region70: #{_lambda_.1} parent=5 // pred_check_branch
        %1862 = sbr.rel (%p1860) target = $region72
      $region71: #{_lambda_.1} parent=5 // pred_region
        %s1863 = ssub.s32 %s20, 2
        // Predicated region
        $region73: #{_lambda_.1} parent=71 // pred_check
          %p1864 = pneg %p295
        $region74: #{_lambda_.1} parent=71 // pred_check_branch
          %1866 = sbr.rel (%p1864) target = $region76
        $region75: #{_lambda_.1} parent=71 // pred_region
          %s1867 = sand.u32 %s280, 1
          %s1868 = scalar_lea.sflag [#allocation3], %s1867
          %s1869 = sand.u32 %s280, 1
          %s1870 = smul.addr %s1869, 8
          %s1871 = scalar_lea.vmem [#allocation2], %s1870
          %1872 = dma.done %s1868, 128
        $region76: #{_lambda_.1} parent=71 // pred_fallthru
          _
      $region72: #{_lambda_.1} parent=5 // pred_fallthru
        _
    $region6: #{_lambda_.1} parent=1 // loop_footer
      %s24 = sadd.s32 1, %s20
    $region7: #{_lambda_.1} parent=1 // loop_footer_branch
      %19 = sbr.rel target = $region3
    $region8: #{_lambda_.1} parent=1 // loop_exit
      _
    %1873 = vsyncpa [#allocation3], 1
    %s1874 = scalar_lea.sflag [#allocation3], 1
    %1875 = vsyncpa %s1874, 1

</llo_original>
